<compile_context>
chip_gen: v7x
topology: tpu7x:2x2x1
jax: 0.10.0
libtpu: 0.0.40
codegen_flags: <defaults>
</compile_context>

<pallas_src>
import math

import jax
import jax.numpy as jnp
from jax.experimental import pallas as pl
from jax.experimental.pallas import tpu as pltpu

PRIOR_SIGMA_1 = 1.0
PRIOR_SIGMA_2 = 0.002
PRIOR_PI = 0.5

# Compile-time constants for the scale-mixture KL:
#   pi*KL(mu,sigma;s1) + (1-pi)*KL(mu,sigma;s2)
#     = 0.5 * ( C_log - 2*log(sigma) + (sigma^2 + mu^2) * C_inv - 1 )
_KL_LOG_PRIOR = (PRIOR_PI * 2.0 * math.log(PRIOR_SIGMA_1)
                 + (1.0 - PRIOR_PI) * 2.0 * math.log(PRIOR_SIGMA_2))
_KL_INV_VAR = PRIOR_PI / PRIOR_SIGMA_1 ** 2 + (1.0 - PRIOR_PI) / PRIOR_SIGMA_2 ** 2


def _round_up(a, b):
    return (a + b - 1) // b * b


def _softplus(x):
    # Numerically stable softplus (naive log1p(exp(x)) overflows for large x).
    return jnp.maximum(x, 0.0) + jnp.log1p(jnp.exp(-jnp.abs(x)))


def _masked_kl_sum(mu, sigma, valid):
    kl = 0.5 * (_KL_LOG_PRIOR - 2.0 * jnp.log(sigma)
                + (sigma * sigma + mu * mu) * _KL_INV_VAR - 1.0)
    return jnp.sum(jnp.where(valid, kl, 0.0))


# --------------------------------- fused forward ---------------------------------
def bayesian_linear_forward(x, weight_mu, weight_rho, bias_mu, bias_rho, key,
                            *, tm=None, tn=None, tk=None,
                            matmul_dtype=jnp.float32):
    """Returns (output, kl_loss), matching BayesianLinear.forward semantics.

    matmul_dtype=jnp.bfloat16 is recommended on v6e/v7x when tolerance allows
    (f32 accumulation is kept via preferred_element_type); default f32 keeps the
    test bit-comparable to the reference.
    """
    out_features, in_features = weight_mu.shape
    batch = x.shape[0]

    kw, kb = jax.random.split(key)
    eps_w = jax.random.normal(kw, weight_mu.shape, dtype=jnp.float32)
    eps_b = jax.random.normal(kb, bias_mu.shape, dtype=jnp.float32)

    # Tile selection: lane-dense last dims (multiples of 128), sublane-aligned
    # second-to-last dims (multiples of 8). tm covers the whole batch up to 256 so
    # that for typical skinny-batch workloads each reparameterized weight tile
    # (softplus -> EUP) is computed exactly once.
    if tm is None:
        tm = min(256, _round_up(batch, 8))
    if tn is None:
        tn = min(256, _round_up(out_features, 128))
    if tk is None:
        tk = min(512, _round_up(in_features, 128))

    M = _round_up(batch, tm)
    N = _round_up(out_features, tn)
    K = _round_up(in_features, tk)
    nbi, nbj, nbk = M // tm, N // tn, K // tk

    f32 = jnp.float32
    xp = jnp.pad(x.astype(f32), ((0, M - batch), (0, K - in_features)))
    wmup = jnp.pad(weight_mu.astype(f32), ((0, N - out_features), (0, K - in_features)))
    wrhp = jnp.pad(weight_rho.astype(f32), ((0, N - out_features), (0, K - in_features)))
    ewp = jnp.pad(eps_w, ((0, N - out_features), (0, K - in_features)))
    bmup = jnp.pad(bias_mu.astype(f32), (0, N - out_features)).reshape(1, N)
    brhp = jnp.pad(bias_rho.astype(f32), (0, N - out_features)).reshape(1, N)
    ebp = jnp.pad(eps_b, (0, N - out_features)).reshape(1, N)

    def kernel(x_ref, wmu_ref, wrho_ref, ew_ref, bmu_ref, brho_ref, eb_ref,
               out_ref, klp_ref, acc_ref, kl_ref):
        i = pl.program_id(0)
        j = pl.program_id(1)
        k = pl.program_id(2)
        nk = pl.num_programs(2)

        @pl.when(k == 0)
        def _init():
            acc_ref[...] = jnp.zeros_like(acc_ref)
            kl_ref[0] = jnp.float32(0.0)

        wmu = wmu_ref[...]                       # (tn, tk)
        w_sigma = _softplus(wrho_ref[...])
        w = wmu + w_sigma * ew_ref[...]          # reparameterized weight tile

        # x @ W.T: contract dim 1 of both operands so the (out, in)-layout weight
        # tile feeds the MXU directly (no in-kernel transpose).
        acc_ref[...] += jax.lax.dot_general(
            x_ref[...].astype(matmul_dtype), w.astype(matmul_dtype),
            dimension_numbers=(((1,), (1,)), ((), ())),
            preferred_element_type=jnp.float32)

        # KL for this weight tile: accumulate once (first batch tile only), masked
        # to the un-padded extent of the parameter matrix.
        @pl.when(i == 0)
        def _kl_weight():
            row = jax.lax.broadcasted_iota(jnp.int32, (tn, tk), 0) + j * tn
            col = jax.lax.broadcasted_iota(jnp.int32, (tn, tk), 1) + k * tk
            valid = (row < out_features) & (col < in_features)
            kl_ref[0] += _masked_kl_sum(wmu, w_sigma, valid)

        @pl.when((i == 0) & (k == nk - 1))
        def _kl_bias():
            col = jax.lax.broadcasted_iota(jnp.int32, (1, tn), 1) + j * tn
            kl_ref[0] += _masked_kl_sum(bmu_ref[...], _softplus(brho_ref[...]),
                                        col < out_features)

        @pl.when(k == nk - 1)
        def _finalize():
            b = bmu_ref[...] + _softplus(brho_ref[...]) * eb_ref[...]   # (1, tn)
            out_ref[...] = (acc_ref[...] + b).astype(out_ref.dtype)
            # Per-(i, j) KL partial, broadcast over a lane-dense (8, 128) block so
            # the store path stays unmasked; the wrapper reads element [0, 0].
            klp_ref[...] = jnp.full((8, 128), kl_ref[0], dtype=jnp.float32)

    grid_spec = pltpu.PrefetchScalarGridSpec(
        num_scalar_prefetch=0,
        grid=(nbi, nbj, nbk),
        in_specs=[
            pl.BlockSpec((tm, tk), lambda i, j, k: (i, k)),   # x
            pl.BlockSpec((tn, tk), lambda i, j, k: (j, k)),   # weight_mu
            pl.BlockSpec((tn, tk), lambda i, j, k: (j, k)),   # weight_rho
            pl.BlockSpec((tn, tk), lambda i, j, k: (j, k)),   # eps_w
            pl.BlockSpec((1, tn), lambda i, j, k: (0, j)),    # bias_mu
            pl.BlockSpec((1, tn), lambda i, j, k: (0, j)),    # bias_rho
            pl.BlockSpec((1, tn), lambda i, j, k: (0, j)),    # eps_b
        ],
        out_specs=(
            pl.BlockSpec((tm, tn), lambda i, j, k: (i, j)),   # y = x @ W.T + b
            pl.BlockSpec((8, 128), lambda i, j, k: (i, j)),   # KL partial per (i, j)
        ),
        scratch_shapes=[
            pltpu.VMEM((tm, tn), jnp.float32),   # matmul accumulator
            pltpu.SMEM((1,), jnp.float32),       # scalar KL accumulator
        ],
    )

    out_p, klp = pl.pallas_call(
        kernel,
        out_shape=(
            jax.ShapeDtypeStruct((M, N), jnp.float32),
            jax.ShapeDtypeStruct((nbi * 8, nbj * 128), jnp.float32),
        ),
        grid_spec=grid_spec,
        compiler_params=pltpu.CompilerParams(
            dimension_semantics=("parallel", "parallel", "arbitrary"),
            vmem_limit_bytes=32 * 1024 * 1024,
        ),
    )(xp, wmup, wrhp, ewp, bmup, brhp, ebp)

    out = out_p[:batch, :out_features]
    kl = jnp.sum(klp[0::8, 0::128])   # one scalar per (i, j) block; i > 0 rows are 0
    return out, kl


# ---------------------------- deterministic parameter init --------------------------
def init_params(key, in_features, out_features):
    k1, k2 = jax.random.split(key)
    # kaiming_uniform_(a=sqrt(5)) -> bound = 1/sqrt(fan_in)
    bound = 1.0 / math.sqrt(in_features)
    weight_mu = jax.random.uniform(k1, (out_features, in_features),
                                   minval=-bound, maxval=bound, dtype=jnp.float32)
    weight_rho = jnp.full((out_features, in_features), -5.0, dtype=jnp.float32)
    bias_mu = jax.random.uniform(k2, (out_features,),
                                 minval=-0.1, maxval=0.1, dtype=jnp.float32)
    bias_rho = jnp.full((out_features,), -5.0, dtype=jnp.float32)
    return weight_mu, weight_rho, bias_mu, bias_rho


# ------------------------------- pure-JAX reference ----------------------------------
def reference_forward(x, weight_mu, weight_rho, bias_mu, bias_rho, key):
    kw, kb = jax.random.split(key)
    eps_w = jax.random.normal(kw, weight_mu.shape, dtype=jnp.float32)
    eps_b = jax.random.normal(kb, bias_mu.shape, dtype=jnp.float32)
    w_sigma = jnp.log1p(jnp.exp(weight_rho))
    b_sigma = jnp.log1p(jnp.exp(bias_rho))
    w = weight_mu + w_sigma * eps_w
    b = bias_mu + b_sigma * eps_b
    out = x @ w.T + b

    def kl_gaussian(mu, sigma, prior_sigma):
        return 0.5 * (jnp.log(prior_sigma ** 2 / sigma ** 2)
                      + (sigma ** 2 + mu ** 2) / prior_sigma ** 2 - 1.0)

    def kl_divergence(mu, sigma):
        return jnp.sum(PRIOR_PI * kl_gaussian(mu, sigma, PRIOR_SIGMA_1)
                       + (1.0 - PRIOR_PI) * kl_gaussian(mu, sigma, PRIOR_SIGMA_2))

    kl = kl_divergence(weight_mu, w_sigma) + kl_divergence(bias_mu, b_sigma)
    return out, kl


if __name__ == "__main__":
    in_features, out_features, batch = 200, 160, 24

    root = jax.random.PRNGKey(0)
    k_param, k_x, k_noise = jax.random.split(root, 3)

    weight_mu, weight_rho, bias_mu, bias_rho = init_params(k_param, in_features, out_features)
    x = jax.random.normal(k_x, (batch, in_features), dtype=jnp.float32)

    ref_out, ref_kl = reference_forward(x, weight_mu, weight_rho, bias_mu, bias_rho, k_noise)

    # Multi-tile config: grid (2, 2, 2) -> exercises tiling, accumulation and
    # padding/masking on every axis.
    out, kl = bayesian_linear_forward(x, weight_mu, weight_rho, bias_mu, bias_rho,
                                      k_noise, tm=16, tn=128, tk=128)
    out = jax.block_until_ready(out)
    kl = jax.block_until_ready(kl)
    assert out.shape == (batch, out_features)
    assert jnp.allclose(out, ref_out, atol=1e-4, rtol=1e-4), "output mismatch (tiled)"
    assert jnp.allclose(kl, ref_kl, rtol=1e-4, atol=1e-2), "KL mismatch (tiled)"

    # Auto-picked tiles (single-tile fast path at this size).
    out2, kl2 = bayesian_linear_forward(x, weight_mu, weight_rho, bias_mu, bias_rho, k_noise)
    out2 = jax.block_until_ready(out2)
    kl2 = jax.block_until_ready(kl2)
    assert jnp.allclose(out2, ref_out, atol=1e-4, rtol=1e-4), "output mismatch (auto)"
    assert jnp.allclose(kl2, ref_kl, rtol=1e-4, atol=1e-2), "KL mismatch (auto)"

    print("KERNEL_OK")
</pallas_src>

<mosaic_0001>
module attributes {stable_mosaic.version = 11 : i64} {
  func.func @kernel(%arg0: i32, %arg1: i32, %arg2: i32, %arg3: memref<16x128xf32, #tpu.memory_space<vmem>>, %arg4: memref<128x128xf32, #tpu.memory_space<vmem>>, %arg5: memref<128x128xf32, #tpu.memory_space<vmem>>, %arg6: memref<128x128xf32, #tpu.memory_space<vmem>>, %arg7: memref<1x128xf32, #tpu.memory_space<vmem>>, %arg8: memref<1x128xf32, #tpu.memory_space<vmem>>, %arg9: memref<1x128xf32, #tpu.memory_space<vmem>>, %arg10: memref<16x128xf32, #tpu.memory_space<vmem>>, %arg11: memref<8x128xf32, #tpu.memory_space<vmem>>, %arg12: memref<16x128xf32, #tpu.memory_space<vmem>>, %arg13: memref<1xf32, #tpu.memory_space<smem>>) attributes {dimension_semantics = [#tpu.dimension_semantics<parallel>, #tpu.dimension_semantics<parallel>, #tpu.dimension_semantics<arbitrary>], iteration_bounds = array<i64: 2, 2, 2>, scalar_prefetch = 0 : i64, scratch_operands = 2 : i64, tpu.core_type = #tpu.core_type<tc>, window_params = [{transform_indices = @transform_0, window_bounds = array<i64: 16, 128>}, {transform_indices = @transform_1, window_bounds = array<i64: 128, 128>}, {transform_indices = @transform_2, window_bounds = array<i64: 128, 128>}, {transform_indices = @transform_3, window_bounds = array<i64: 128, 128>}, {transform_indices = @transform_4, window_bounds = array<i64: 1, 128>}, {transform_indices = @transform_5, window_bounds = array<i64: 1, 128>}, {transform_indices = @transform_6, window_bounds = array<i64: 1, 128>}, {transform_indices = @transform_7, window_bounds = array<i64: 16, 128>}, {transform_indices = @transform_8, window_bounds = array<i64: 8, 128>}]} {
    %c0_i32 = arith.constant 0 : i32
    %0 = arith.cmpi eq, %arg2, %c0_i32 : i32
    %1 = arith.extui %0 : i1 to i32
    %c0_i32_0 = arith.constant 0 : i32
    %2 = arith.cmpi ne, %1, %c0_i32_0 : i32
    scf.if %2 {
      %cst_20 = arith.constant 0.000000e+00 : f32
      %32 = vector.broadcast %cst_20 : f32 to vector<16x128xf32>
      %c0_21 = arith.constant 0 : index
      %c0_22 = arith.constant 0 : index
      %33 = vector.load %arg12[%c0_21, %c0_22] : memref<16x128xf32, #tpu.memory_space<vmem>>, vector<16x128xf32>
      tpu.vector_store %arg12[%c0_21, %c0_22], %32 {strides = array<i32>} : memref<16x128xf32, #tpu.memory_space<vmem>>, vector<16x128xf32>,
      %cst_23 = arith.constant 0.000000e+00 : f32
      %c0_24 = arith.constant 0 : index
      %34 = memref.load %arg13[%c0_24] : memref<1xf32, #tpu.memory_space<smem>>
      memref.store %cst_23, %arg13[%c0_24] : memref<1xf32, #tpu.memory_space<smem>>
    } else {
    }
    %c0 = arith.constant 0 : index
    %c0_1 = arith.constant 0 : index
    %3 = vector.load %arg4[%c0, %c0_1] : memref<128x128xf32, #tpu.memory_space<vmem>>, vector<128x128xf32>
    %c0_2 = arith.constant 0 : index
    %c0_3 = arith.constant 0 : index
    %4 = vector.load %arg5[%c0_2, %c0_3] : memref<128x128xf32, #tpu.memory_space<vmem>>, vector<128x128xf32>
    %cst = arith.constant 0.000000e+00 : f32
    %5 = vector.broadcast %cst : f32 to vector<128x128xf32>
    %6 = arith.maximumf %4, %5 : vector<128x128xf32>
    %7 = math.absf %4 : vector<128x128xf32>
    %cst_4 = arith.constant 0.000000e+00 : f32
    %8 = vector.broadcast %cst_4 : f32 to vector<128x128xf32>
    %9 = arith.subf %8, %7 : vector<128x128xf32>
    %10 = math.exp %9 : vector<128x128xf32>
    %11 = math.log1p %10 : vector<128x128xf32>
    %12 = arith.addf %6, %11 : vector<128x128xf32>
    %c0_5 = arith.constant 0 : index
    %c0_6 = arith.constant 0 : index
    %13 = vector.load %arg6[%c0_5, %c0_6] : memref<128x128xf32, #tpu.memory_space<vmem>>, vector<128x128xf32>
    %14 = arith.mulf %12, %13 : vector<128x128xf32>
    %15 = arith.addf %3, %14 : vector<128x128xf32>
    %c0_7 = arith.constant 0 : index
    %c0_8 = arith.constant 0 : index
    %16 = vector.load %arg12[%c0_7, %c0_8] : memref<16x128xf32, #tpu.memory_space<vmem>>, vector<16x128xf32>
    %c0_9 = arith.constant 0 : index
    %c0_10 = arith.constant 0 : index
    %17 = vector.load %arg3[%c0_9, %c0_10] : memref<16x128xf32, #tpu.memory_space<vmem>>, vector<16x128xf32>
    %cst_11 = arith.constant dense<0.000000e+00> : vector<16x128xf32>
    %18 = tpu.matmul %17, %15, %cst_11 {dimension_numbers = #tpu.dot_dimension_numbers<[1], [1], [0], [0], [0, 0, 1, 0], [], []>} : vector<16x128xf32>, vector<128x128xf32>, vector<16x128xf32> -> vector<16x128xf32>
    %19 = arith.addf %16, %18 : vector<16x128xf32>
    %c0_12 = arith.constant 0 : index
    %c0_13 = arith.constant 0 : index
    %20 = vector.load %arg12[%c0_12, %c0_13] : memref<16x128xf32, #tpu.memory_space<vmem>>, vector<16x128xf32>
    tpu.vector_store %arg12[%c0_12, %c0_13], %19 {strides = array<i32>} : memref<16x128xf32, #tpu.memory_space<vmem>>, vector<16x128xf32>,
    %c0_i32_14 = arith.constant 0 : i32
    %21 = arith.cmpi eq, %arg0, %c0_i32_14 : i32
    %22 = arith.extui %21 : i1 to i32
    %c0_i32_15 = arith.constant 0 : i32
    %23 = arith.cmpi ne, %22, %c0_i32_15 : i32
    scf.if %23 {
      %32 = tpu.iota {dimensions = array<i32: 0>} : vector<128x128xi32>
      %c128_i32 = arith.constant 128 : i32
      %33 = arith.muli %arg1, %c128_i32 : i32
      %34 = vector.broadcast %33 : i32 to vector<128x128xi32>
      %35 = arith.addi %32, %34 : vector<128x128xi32>
      %36 = tpu.iota {dimensions = array<i32: 1>} : vector<128x128xi32>
      %c128_i32_20 = arith.constant 128 : i32
      %37 = arith.muli %arg2, %c128_i32_20 : i32
      %38 = vector.broadcast %37 : i32 to vector<128x128xi32>
      %39 = arith.addi %36, %38 : vector<128x128xi32>
      %c160_i32 = arith.constant 160 : i32
      %40 = vector.broadcast %c160_i32 : i32 to vector<128x128xi32>
      %41 = arith.cmpi slt, %35, %40 : vector<128x128xi32>
      %c200_i32 = arith.constant 200 : i32
      %42 = vector.broadcast %c200_i32 : i32 to vector<128x128xi32>
      %43 = arith.cmpi slt, %39, %42 : vector<128x128xi32>
      %44 = arith.andi %41, %43 : vector<128x128xi1>
      %c0_21 = arith.constant 0 : index
      %45 = memref.load %arg13[%c0_21] : memref<1xf32, #tpu.memory_space<smem>>
      %46 = math.log %12 : vector<128x128xf32>
      %cst_22 = arith.constant 2.000000e+00 : f32
      %47 = vector.broadcast %cst_22 : f32 to vector<128x128xf32>
      %48 = arith.mulf %47, %46 : vector<128x128xf32>
      %cst_23 = arith.constant -6.21460819 : f32
      %49 = vector.broadcast %cst_23 : f32 to vector<128x128xf32>
      %50 = arith.subf %49, %48 : vector<128x128xf32>
      %51 = arith.mulf %12, %12 : vector<128x128xf32>
      %52 = arith.mulf %3, %3 : vector<128x128xf32>
      %53 = arith.addf %51, %52 : vector<128x128xf32>
      %cst_24 = arith.constant 125000.5 : f32
      %54 = vector.broadcast %cst_24 : f32 to vector<128x128xf32>
      %55 = arith.mulf %53, %54 : vector<128x128xf32>
      %56 = arith.addf %50, %55 : vector<128x128xf32>
      %cst_25 = arith.constant 1.000000e+00 : f32
      %57 = vector.broadcast %cst_25 : f32 to vector<128x128xf32>
      %58 = arith.subf %56, %57 : vector<128x128xf32>
      %cst_26 = arith.constant 5.000000e-01 : f32
      %59 = vector.broadcast %cst_26 : f32 to vector<128x128xf32>
      %60 = arith.mulf %59, %58 : vector<128x128xf32>
      %cst_27 = arith.constant 0.000000e+00 : f32
      %61 = vector.broadcast %cst_27 : f32 to vector<128x128xf32>
      %62 = arith.select %44, %60, %61 : vector<128x128xi1>, vector<128x128xf32>
      %63 = vector.shape_cast %62 : vector<128x128xf32> to vector<1x128x128xf32>
      %cst_28 = arith.constant dense<0.000000e+00> : vector<1xf32>
      %64 = vector.multi_reduction <add>, %63, %cst_28 [1, 2] : vector<1x128x128xf32> to vector<1xf32>
      %65 = vector.shape_cast %64 : vector<1xf32> to vector<1x1x1xf32>
      %66 = vector.extract %65[0, 0, 0] : f32 from vector<1x1x1xf32>
      %67 = arith.addf %45, %66 : f32
      %c0_29 = arith.constant 0 : index
      %68 = memref.load %arg13[%c0_29] : memref<1xf32, #tpu.memory_space<smem>>
      memref.store %67, %arg13[%c0_29] : memref<1xf32, #tpu.memory_space<smem>>
    } else {
    }
    %c0_i32_16 = arith.constant 0 : i32
    %24 = arith.cmpi eq, %arg0, %c0_i32_16 : i32
    %c1_i32 = arith.constant 1 : i32
    %25 = arith.cmpi eq, %arg2, %c1_i32 : i32
    %26 = arith.andi %24, %25 : i1
    %27 = arith.extui %26 : i1 to i32
    %c0_i32_17 = arith.constant 0 : i32
    %28 = arith.cmpi ne, %27, %c0_i32_17 : i32
    scf.if %28 {
      %32 = tpu.iota {dimensions = array<i32: 1>} : vector<1x128xi32>
      %c128_i32 = arith.constant 128 : i32
      %33 = arith.muli %arg1, %c128_i32 : i32
      %34 = vector.broadcast %33 : i32 to vector<1x128xi32>
      %35 = arith.addi %32, %34 : vector<1x128xi32>
      %c0_20 = arith.constant 0 : index
      %36 = memref.load %arg13[%c0_20] : memref<1xf32, #tpu.memory_space<smem>>
      %c0_21 = arith.constant 0 : index
      %c0_22 = arith.constant 0 : index
      %37 = vector.load %arg7[%c0_21, %c0_22] : memref<1x128xf32, #tpu.memory_space<vmem>>, vector<1x128xf32>
      %c0_23 = arith.constant 0 : index
      %c0_24 = arith.constant 0 : index
      %38 = vector.load %arg8[%c0_23, %c0_24] : memref<1x128xf32, #tpu.memory_space<vmem>>, vector<1x128xf32>
      %cst_25 = arith.constant 0.000000e+00 : f32
      %39 = vector.broadcast %cst_25 : f32 to vector<1x128xf32>
      %40 = arith.maximumf %38, %39 : vector<1x128xf32>
      %41 = math.absf %38 : vector<1x128xf32>
      %cst_26 = arith.constant 0.000000e+00 : f32
      %42 = vector.broadcast %cst_26 : f32 to vector<1x128xf32>
      %43 = arith.subf %42, %41 : vector<1x128xf32>
      %44 = math.exp %43 : vector<1x128xf32>
      %45 = math.log1p %44 : vector<1x128xf32>
      %46 = arith.addf %40, %45 : vector<1x128xf32>
      %c160_i32 = arith.constant 160 : i32
      %47 = vector.broadcast %c160_i32 : i32 to vector<1x128xi32>
      %48 = arith.cmpi slt, %35, %47 : vector<1x128xi32>
      %49 = math.log %46 : vector<1x128xf32>
      %cst_27 = arith.constant 2.000000e+00 : f32
      %50 = vector.broadcast %cst_27 : f32 to vector<1x128xf32>
      %51 = arith.mulf %50, %49 : vector<1x128xf32>
      %cst_28 = arith.constant -6.21460819 : f32
      %52 = vector.broadcast %cst_28 : f32 to vector<1x128xf32>
      %53 = arith.subf %52, %51 : vector<1x128xf32>
      %54 = arith.mulf %46, %46 : vector<1x128xf32>
      %55 = arith.mulf %37, %37 : vector<1x128xf32>
      %56 = arith.addf %54, %55 : vector<1x128xf32>
      %cst_29 = arith.constant 125000.5 : f32
      %57 = vector.broadcast %cst_29 : f32 to vector<1x128xf32>
      %58 = arith.mulf %56, %57 : vector<1x128xf32>
      %59 = arith.addf %53, %58 : vector<1x128xf32>
      %cst_30 = arith.constant 1.000000e+00 : f32
      %60 = vector.broadcast %cst_30 : f32 to vector<1x128xf32>
      %61 = arith.subf %59, %60 : vector<1x128xf32>
      %cst_31 = arith.constant 5.000000e-01 : f32
      %62 = vector.broadcast %cst_31 : f32 to vector<1x128xf32>
      %63 = arith.mulf %62, %61 : vector<1x128xf32>
      %cst_32 = arith.constant 0.000000e+00 : f32
      %64 = vector.broadcast %cst_32 : f32 to vector<1x128xf32>
      %65 = arith.select %48, %63, %64 : vector<1x128xi1>, vector<1x128xf32>
      %66 = vector.shape_cast %65 : vector<1x128xf32> to vector<1x1x128xf32>
      %cst_33 = arith.constant dense<0.000000e+00> : vector<1xf32>
      %67 = vector.multi_reduction <add>, %66, %cst_33 [1, 2] : vector<1x1x128xf32> to vector<1xf32>
      %68 = vector.shape_cast %67 : vector<1xf32> to vector<1x1x1xf32>
      %69 = vector.extract %68[0, 0, 0] : f32 from vector<1x1x1xf32>
      %70 = arith.addf %36, %69 : f32
      %c0_34 = arith.constant 0 : index
      %71 = memref.load %arg13[%c0_34] : memref<1xf32, #tpu.memory_space<smem>>
      memref.store %70, %arg13[%c0_34] : memref<1xf32, #tpu.memory_space<smem>>
    } else {
    }
    %c1_i32_18 = arith.constant 1 : i32
    %29 = arith.cmpi eq, %arg2, %c1_i32_18 : i32
    %30 = arith.extui %29 : i1 to i32
    %c0_i32_19 = arith.constant 0 : i32
    %31 = arith.cmpi ne, %30, %c0_i32_19 : i32
    scf.if %31 {
      %c0_20 = arith.constant 0 : index
      %c0_21 = arith.constant 0 : index
      %32 = vector.load %arg7[%c0_20, %c0_21] : memref<1x128xf32, #tpu.memory_space<vmem>>, vector<1x128xf32>
      %c0_22 = arith.constant 0 : index
      %c0_23 = arith.constant 0 : index
      %33 = vector.load %arg8[%c0_22, %c0_23] : memref<1x128xf32, #tpu.memory_space<vmem>>, vector<1x128xf32>
      %cst_24 = arith.constant 0.000000e+00 : f32
      %34 = vector.broadcast %cst_24 : f32 to vector<1x128xf32>
      %35 = arith.maximumf %33, %34 : vector<1x128xf32>
      %36 = math.absf %33 : vector<1x128xf32>
      %cst_25 = arith.constant 0.000000e+00 : f32
      %37 = vector.broadcast %cst_25 : f32 to vector<1x128xf32>
      %38 = arith.subf %37, %36 : vector<1x128xf32>
      %39 = math.exp %38 : vector<1x128xf32>
      %40 = math.log1p %39 : vector<1x128xf32>
      %41 = arith.addf %35, %40 : vector<1x128xf32>
      %c0_26 = arith.constant 0 : index
      %c0_27 = arith.constant 0 : index
      %42 = vector.load %arg9[%c0_26, %c0_27] : memref<1x128xf32, #tpu.memory_space<vmem>>, vector<1x128xf32>
      %43 = arith.mulf %41, %42 : vector<1x128xf32>
      %44 = arith.addf %32, %43 : vector<1x128xf32>
      %c0_28 = arith.constant 0 : index
      %c0_29 = arith.constant 0 : index
      %45 = vector.load %arg12[%c0_28, %c0_29] : memref<16x128xf32, #tpu.memory_space<vmem>>, vector<16x128xf32>
      %46 = vector.broadcast %44 : vector<1x128xf32> to vector<16x128xf32>
      %47 = arith.addf %45, %46 : vector<16x128xf32>
      %c0_30 = arith.constant 0 : index
      %c0_31 = arith.constant 0 : index
      %48 = vector.load %arg10[%c0_30, %c0_31] : memref<16x128xf32, #tpu.memory_space<vmem>>, vector<16x128xf32>
      tpu.vector_store %arg10[%c0_30, %c0_31], %47 {strides = array<i32>} : memref<16x128xf32, #tpu.memory_space<vmem>>, vector<16x128xf32>,
      %c0_32 = arith.constant 0 : index
      %49 = memref.load %arg13[%c0_32] : memref<1xf32, #tpu.memory_space<smem>>
      %50 = vector.broadcast %49 : f32 to vector<8x128xf32>
      %c0_33 = arith.constant 0 : index
      %c0_34 = arith.constant 0 : index
      %51 = vector.load %arg11[%c0_33, %c0_34] : memref<8x128xf32, #tpu.memory_space<vmem>>, vector<8x128xf32>
      tpu.vector_store %arg11[%c0_33, %c0_34], %50 {strides = array<i32>} : memref<8x128xf32, #tpu.memory_space<vmem>>, vector<8x128xf32>,
    } else {
    }
    return
  }
  func.func @transform_0(%arg0: i32, %arg1: i32, %arg2: i32) -> (i32, i32) {
    %c0_i32 = arith.constant 0 : i32
    return %arg0, %arg2 : i32, i32
  }
  func.func @transform_1(%arg0: i32, %arg1: i32, %arg2: i32) -> (i32, i32) {
    %c0_i32 = arith.constant 0 : i32
    return %arg1, %arg2 : i32, i32
  }
  func.func @transform_2(%arg0: i32, %arg1: i32, %arg2: i32) -> (i32, i32) {
    %c0_i32 = arith.constant 0 : i32
    return %arg1, %arg2 : i32, i32
  }
  func.func @transform_3(%arg0: i32, %arg1: i32, %arg2: i32) -> (i32, i32) {
    %c0_i32 = arith.constant 0 : i32
    return %arg1, %arg2 : i32, i32
  }
  func.func @transform_4(%arg0: i32, %arg1: i32, %arg2: i32) -> (i32, i32) {
    %c0_i32 = arith.constant 0 : i32
    %c0_i32_0 = arith.constant 0 : i32
    return %c0_i32, %arg1 : i32, i32
  }
  func.func @transform_5(%arg0: i32, %arg1: i32, %arg2: i32) -> (i32, i32) {
    %c0_i32 = arith.constant 0 : i32
    %c0_i32_0 = arith.constant 0 : i32
    return %c0_i32, %arg1 : i32, i32
  }
  func.func @transform_6(%arg0: i32, %arg1: i32, %arg2: i32) -> (i32, i32) {
    %c0_i32 = arith.constant 0 : i32
    %c0_i32_0 = arith.constant 0 : i32
    return %c0_i32, %arg1 : i32, i32
  }
  func.func @transform_7(%arg0: i32, %arg1: i32, %arg2: i32) -> (i32, i32) {
    %c0_i32 = arith.constant 0 : i32
    return %arg0, %arg1 : i32, i32
  }
  func.func @transform_8(%arg0: i32, %arg1: i32, %arg2: i32) -> (i32, i32) {
    %c0_i32 = arith.constant 0 : i32
    return %arg0, %arg1 : i32, i32
  }
}

</mosaic_0001>

<llo_original>
// kernel: tpu_custom_call.1
$region0: #{tpu_custom_call.1}
  #allocation0 [shape = 'u32[]', space=smem, size = 0x4, offset = 0x4, fixed_abs, tag = 'smem constant byte address 0x4 - core index']
  #allocation1 [shape = 'u32[144,128]{1,0:T(1,128)}', space=vmem, size = 0x12000, scoped, tag = 'internal scratch']
  #allocation2 [shape = 'f32[16,128]{1,0:T(8,128)}', space=vmem, size = 0x2000, scoped, tag = 'scratch operand']
  #allocation3 [shape = 'f32[1]{0:T(128)}', space=smem, size = 0x200, scoped, tag = 'scratch operand']
  %s0 = inlined_call_operand.hbm [shape: f32[32,256], index: 0, kind: input, shape index: {}]
  %s1 = inlined_call_operand.hbm [shape: f32[256,256], index: 1, kind: input, shape index: {}]
  %s2 = inlined_call_operand.hbm [shape: f32[256,256], index: 2, kind: input, shape index: {}]
  %s3 = inlined_call_operand.hbm [shape: f32[256,256], index: 3, kind: input, shape index: {}]
  %s4 = inlined_call_operand.vmem [shape: f32[1,256], index: 4, kind: input, shape index: {}]
  %s5 = inlined_call_operand.vmem [shape: f32[1,256], index: 5, kind: input, shape index: {}]
  %s6 = inlined_call_operand.vmem [shape: f32[1,256], index: 6, kind: input, shape index: {}]
  %s7 = inlined_call_operand.hbm [shape: f32[32,256], index: 7, kind: output, shape index: {0}]
  %s8 = inlined_call_operand.hbm [shape: f32[16,256], index: 8, kind: output, shape index: {1}]
  %9 = xla_tuple %s7, %s8
  %s10 = sld [smem:[#allocation0]]
  $region101: #{tpu_custom_call.1} parent=0
    _
  %s12 = ssub.s32 1, %s10
  %s13 = scalar_select 0, %s12, %s10
  $region1: #{tpu_custom_call.1} parent=0
    #allocation4 [shape = 'u8[16384]{0}', space=vmem, size = 0x4000, scoped, tag = 'input window, operand 0']
    #allocation5 [shape = 's32[2]{0}', space=sflag, size = 0x8, scoped, tag = 'scoped memory for tpu_custom_call.1']
    #allocation6 [shape = 's32[2]{0}', space=sflag, size = 0x8, scoped, tag = 'scoped memory for tpu_custom_call.1']
    #allocation7 [shape = 'u8[131072]{0}', space=vmem, size = 0x20000, scoped, tag = 'input window, operand 1']
    #allocation8 [shape = 's32[2]{0}', space=sflag, size = 0x8, scoped, tag = 'scoped memory for tpu_custom_call.1']
    #allocation9 [shape = 'u8[131072]{0}', space=vmem, size = 0x20000, scoped, tag = 'input window, operand 2']
    #allocation10 [shape = 'u8[131072]{0}', space=vmem, size = 0x20000, scoped, tag = 'input window, operand 3']
    #allocation11 [shape = 's32[2]{0}', space=sflag, size = 0x8, scoped, tag = 'scoped memory for tpu_custom_call.1']
    #allocation12 [shape = 'u8[16384]{0}', space=vmem, size = 0x4000, scoped, tag = 'output window, operand 0']
    #allocation13 [shape = 'u8[8192]{0}', space=vmem, size = 0x2000, scoped, tag = 'output window, operand 1']
    #allocation14 [shape = 's32[2]{0}', space=sflag, size = 0x8, scoped, tag = 'scoped memory for tpu_custom_call.1']
    %14 = vsyncpa [#allocation5], 0
    %s15 = scalar_lea.sflag [#allocation5], 1
    %16 = vsyncpa %s15, 0
    %17 = vsyncpa [#allocation8], 0
    %s18 = scalar_lea.sflag [#allocation8], 1
    %19 = vsyncpa %s18, 0
    %20 = vsyncpa [#allocation11], 0
    %s21 = scalar_lea.sflag [#allocation11], 1
    %22 = vsyncpa %s21, 0
    %23 = vsyncpa [#allocation6], 0
    %s24 = scalar_lea.sflag [#allocation6], 1
    %25 = vsyncpa %s24, 0
    %26 = vsyncpa [#allocation14], 0
    %s27 = scalar_lea.sflag [#allocation14], 1
    %28 = vsyncpa %s27, 0
    loop: start=0, step=1, limit=10
    $region2: #{tpu_custom_call.1} parent=1 // loop_pre_header
      _
    $region3: #{tpu_custom_call.1} parent=1 // loop_header
      %s30 = sphi 0, %s34
      %p31 = scmp.ge.s32.totalorder %s30, 10
      %s37 = sphi 0, %s56
      %s38 = sphi 0, %s52
      %s39 = sphi 0, %s48
      %s40 = sphi 0, %s37
      %s41 = sphi 0, %s38
      %s42 = sphi 0, %s39
      %s43 = sphi 0, %s40
      %s44 = sphi 0, %s41
      %s45 = sphi 0, %s42
      %s61 = sphi 0, %s63
      %s64 = sphi 0, %s61
      %s65 = sphi 0, %s64
      %s81 = sphi 0, %s65
      %s89 = sphi 0, %s91
      %s92 = sphi 0, %s89
      %s93 = sphi 0, %s92
      %s109 = sphi 0, %s93
      %s117 = sphi 0, %s119
      %s120 = sphi 0, %s117
      %s121 = sphi 0, %s120
      %s137 = sphi 0, %s121
      %s145 = sphi 0, %s147
      %s148 = sphi 0, %s145
      %s149 = sphi 0, %s148
      %s165 = sphi 0, %s149
      %s171 = sphi 0, %s173
      %s174 = sphi 0, %s171
      %s175 = sphi 0, %s174
      %s191 = sphi 0, %s175
      %s197 = sphi 0, %s199
      %s200 = sphi 0, %s197
      %s201 = sphi 0, %s200
      %s217 = sphi 0, %s201
      %s223 = sphi 0, %s225
      %s226 = sphi 0, %s223
      %s227 = sphi 0, %s226
      %s243 = sphi 0, %s227
      %s251 = sphi 0, %s253
      %s254 = sphi 0, %s251
      %s255 = sphi 0, %s254
      %s271 = sphi 0, %s255
      %s279 = sphi 0, %s281
      %s282 = sphi 0, %s279
      %s283 = sphi 0, %s282
      %s299 = sphi 0, %s283
    $region4: #{tpu_custom_call.1} parent=1 // loop_header_branch
      %33 = sbr.rel (%p31) target = $region8
    $region5: #{tpu_custom_call.1} parent=1 // loop_body
      %s35 = ssub.s32 %s30, 1
      %s36 = ssub.s32 %s30, 2
      %s46 = sadd.s32 1, %s39
      %p47 = scmp.ge.s32.totalorder %s46, 2
      %s48 = scalar_select %p47, 0, %s46
      %s49 = sadd.s32 1, %s38
      %s50 = scalar_select %p47, %s49, %s38
      %p51 = scmp.ge.s32.totalorder %s50, 2
      %s52 = scalar_select %p51, 0, %s50
      %s53 = sadd.s32 1, %s37
      %s54 = scalar_select %p51, %s53, %s37
      %p55 = scmp.ge.s32.totalorder %s54, 2
      %s56 = scalar_select %p55, 0, %s54
      %s57 = ssub.s32 %s37, %s56
      %s58 = ssub.s32 %s39, %s48
      %s59 = sor.u32 %s57, %s58
      %p60 = scmp.eq.s32.totalorder %s59, 0
      %s62 = sadd.s32 %s61, 1
      %s63 = scalar_select %p60, %s61, %s62
      %p66 = pneg %p60
      %p67 = scmp.eq.s32.totalorder %s30, 7
      %p68 = por %p66, %p67
      %p69 = scmp.ne.s32.totalorder %s61, %s64
      %p70 = scmp.eq.s32.totalorder %s30, 0
      %p71 = por %p69, %p70
      %p72 = scmp.ne.s32.totalorder %s61, %s64
      %p73 = scmp.eq.s32.totalorder %s35, 7
      %p74 = por %p72, %p73
      %p75 = scmp.ne.s32.totalorder %s64, %s65
      %p76 = scmp.eq.s32.totalorder %s35, 0
      %p77 = por %p75, %p76
      %p78 = scmp.ne.s32.totalorder %s64, %s65
      %p79 = scmp.eq.s32.totalorder %s36, 7
      %p80 = por %p78, %p79
      %p82 = scmp.ne.s32.totalorder %s65, %s81
      %p83 = scmp.eq.s32.totalorder %s36, 0
      %p84 = por %p82, %p83
      %s85 = ssub.s32 %s38, %s52
      %s86 = ssub.s32 %s39, %s48
      %s87 = sor.u32 %s85, %s86
      %p88 = scmp.eq.s32.totalorder %s87, 0
      %s90 = sadd.s32 %s89, 1
      %s91 = scalar_select %p88, %s89, %s90
      %p94 = pneg %p88
      %p95 = scmp.eq.s32.totalorder %s30, 7
      %p96 = por %p94, %p95
      %p97 = scmp.ne.s32.totalorder %s89, %s92
      %p98 = scmp.eq.s32.totalorder %s30, 0
      %p99 = por %p97, %p98
      %p100 = scmp.ne.s32.totalorder %s89, %s92
      %p101 = scmp.eq.s32.totalorder %s35, 7
      %p102 = por %p100, %p101
      %p103 = scmp.ne.s32.totalorder %s92, %s93
      %p104 = scmp.eq.s32.totalorder %s35, 0
      %p105 = por %p103, %p104
      %p106 = scmp.ne.s32.totalorder %s92, %s93
      %p107 = scmp.eq.s32.totalorder %s36, 7
      %p108 = por %p106, %p107
      %p110 = scmp.ne.s32.totalorder %s93, %s109
      %p111 = scmp.eq.s32.totalorder %s36, 0
      %p112 = por %p110, %p111
      %s113 = ssub.s32 %s38, %s52
      %s114 = ssub.s32 %s39, %s48
      %s115 = sor.u32 %s113, %s114
      %p116 = scmp.eq.s32.totalorder %s115, 0
      %s118 = sadd.s32 %s117, 1
      %s119 = scalar_select %p116, %s117, %s118
      %p122 = pneg %p116
      %p123 = scmp.eq.s32.totalorder %s30, 7
      %p124 = por %p122, %p123
      %p125 = scmp.ne.s32.totalorder %s117, %s120
      %p126 = scmp.eq.s32.totalorder %s30, 0
      %p127 = por %p125, %p126
      %p128 = scmp.ne.s32.totalorder %s117, %s120
      %p129 = scmp.eq.s32.totalorder %s35, 7
      %p130 = por %p128, %p129
      %p131 = scmp.ne.s32.totalorder %s120, %s121
      %p132 = scmp.eq.s32.totalorder %s35, 0
      %p133 = por %p131, %p132
      %p134 = scmp.ne.s32.totalorder %s120, %s121
      %p135 = scmp.eq.s32.totalorder %s36, 7
      %p136 = por %p134, %p135
      %p138 = scmp.ne.s32.totalorder %s121, %s137
      %p139 = scmp.eq.s32.totalorder %s36, 0
      %p140 = por %p138, %p139
      %s141 = ssub.s32 %s38, %s52
      %s142 = ssub.s32 %s39, %s48
      %s143 = sor.u32 %s141, %s142
      %p144 = scmp.eq.s32.totalorder %s143, 0
      %s146 = sadd.s32 %s145, 1
      %s147 = scalar_select %p144, %s145, %s146
      %p150 = pneg %p144
      %p151 = scmp.eq.s32.totalorder %s30, 7
      %p152 = por %p150, %p151
      %p153 = scmp.ne.s32.totalorder %s145, %s148
      %p154 = scmp.eq.s32.totalorder %s30, 0
      %p155 = por %p153, %p154
      %p156 = scmp.ne.s32.totalorder %s145, %s148
      %p157 = scmp.eq.s32.totalorder %s35, 7
      %p158 = por %p156, %p157
      %p159 = scmp.ne.s32.totalorder %s148, %s149
      %p160 = scmp.eq.s32.totalorder %s35, 0
      %p161 = por %p159, %p160
      %p162 = scmp.ne.s32.totalorder %s148, %s149
      %p163 = scmp.eq.s32.totalorder %s36, 7
      %p164 = por %p162, %p163
      %p166 = scmp.ne.s32.totalorder %s149, %s165
      %p167 = scmp.eq.s32.totalorder %s36, 0
      %p168 = por %p166, %p167
      %s169 = ssub.s32 %s38, %s52
      %p170 = scmp.eq.s32.totalorder %s169, 0
      %s172 = sadd.s32 %s171, 1
      %s173 = scalar_select %p170, %s171, %s172
      %p176 = pneg %p170
      %p177 = scmp.eq.s32.totalorder %s30, 7
      %p178 = por %p176, %p177
      %p179 = scmp.ne.s32.totalorder %s171, %s174
      %p180 = scmp.eq.s32.totalorder %s30, 0
      %p181 = por %p179, %p180
      %p182 = scmp.ne.s32.totalorder %s171, %s174
      %p183 = scmp.eq.s32.totalorder %s35, 7
      %p184 = por %p182, %p183
      %p185 = scmp.ne.s32.totalorder %s174, %s175
      %p186 = scmp.eq.s32.totalorder %s35, 0
      %p187 = por %p185, %p186
      %p188 = scmp.ne.s32.totalorder %s174, %s175
      %p189 = scmp.eq.s32.totalorder %s36, 7
      %p190 = por %p188, %p189
      %p192 = scmp.ne.s32.totalorder %s175, %s191
      %p193 = scmp.eq.s32.totalorder %s36, 0
      %p194 = por %p192, %p193
      %s195 = ssub.s32 %s38, %s52
      %p196 = scmp.eq.s32.totalorder %s195, 0
      %s198 = sadd.s32 %s197, 1
      %s199 = scalar_select %p196, %s197, %s198
      %p202 = pneg %p196
      %p203 = scmp.eq.s32.totalorder %s30, 7
      %p204 = por %p202, %p203
      %p205 = scmp.ne.s32.totalorder %s197, %s200
      %p206 = scmp.eq.s32.totalorder %s30, 0
      %p207 = por %p205, %p206
      %p208 = scmp.ne.s32.totalorder %s197, %s200
      %p209 = scmp.eq.s32.totalorder %s35, 7
      %p210 = por %p208, %p209
      %p211 = scmp.ne.s32.totalorder %s200, %s201
      %p212 = scmp.eq.s32.totalorder %s35, 0
      %p213 = por %p211, %p212
      %p214 = scmp.ne.s32.totalorder %s200, %s201
      %p215 = scmp.eq.s32.totalorder %s36, 7
      %p216 = por %p214, %p215
      %p218 = scmp.ne.s32.totalorder %s201, %s217
      %p219 = scmp.eq.s32.totalorder %s36, 0
      %p220 = por %p218, %p219
      %s221 = ssub.s32 %s38, %s52
      %p222 = scmp.eq.s32.totalorder %s221, 0
      %s224 = sadd.s32 %s223, 1
      %s225 = scalar_select %p222, %s223, %s224
      %p228 = pneg %p222
      %p229 = scmp.eq.s32.totalorder %s30, 7
      %p230 = por %p228, %p229
      %p231 = scmp.ne.s32.totalorder %s223, %s226
      %p232 = scmp.eq.s32.totalorder %s30, 0
      %p233 = por %p231, %p232
      %p234 = scmp.ne.s32.totalorder %s223, %s226
      %p235 = scmp.eq.s32.totalorder %s35, 7
      %p236 = por %p234, %p235
      %p237 = scmp.ne.s32.totalorder %s226, %s227
      %p238 = scmp.eq.s32.totalorder %s35, 0
      %p239 = por %p237, %p238
      %p240 = scmp.ne.s32.totalorder %s226, %s227
      %p241 = scmp.eq.s32.totalorder %s36, 7
      %p242 = por %p240, %p241
      %p244 = scmp.ne.s32.totalorder %s227, %s243
      %p245 = scmp.eq.s32.totalorder %s36, 0
      %p246 = por %p244, %p245
      %s247 = ssub.s32 %s37, %s56
      %s248 = ssub.s32 %s38, %s52
      %s249 = sor.u32 %s247, %s248
      %p250 = scmp.eq.s32.totalorder %s249, 0
      %s252 = sadd.s32 %s251, 1
      %s253 = scalar_select %p250, %s251, %s252
      %p256 = pneg %p250
      %p257 = scmp.eq.s32.totalorder %s30, 7
      %p258 = por %p256, %p257
      %p259 = scmp.ne.s32.totalorder %s251, %s254
      %p260 = scmp.eq.s32.totalorder %s30, 0
      %p261 = por %p259, %p260
      %p262 = scmp.ne.s32.totalorder %s251, %s254
      %p263 = scmp.eq.s32.totalorder %s35, 7
      %p264 = por %p262, %p263
      %p265 = scmp.ne.s32.totalorder %s254, %s255
      %p266 = scmp.eq.s32.totalorder %s35, 0
      %p267 = por %p265, %p266
      %p268 = scmp.ne.s32.totalorder %s254, %s255
      %p269 = scmp.eq.s32.totalorder %s36, 7
      %p270 = por %p268, %p269
      %p272 = scmp.ne.s32.totalorder %s255, %s271
      %p273 = scmp.eq.s32.totalorder %s36, 0
      %p274 = por %p272, %p273
      %s275 = ssub.s32 %s37, %s56
      %s276 = ssub.s32 %s38, %s52
      %s277 = sor.u32 %s275, %s276
      %p278 = scmp.eq.s32.totalorder %s277, 0
      %s280 = sadd.s32 %s279, 1
      %s281 = scalar_select %p278, %s279, %s280
      %p284 = pneg %p278
      %p285 = scmp.eq.s32.totalorder %s30, 7
      %p286 = por %p284, %p285
      %p287 = scmp.ne.s32.totalorder %s279, %s282
      %p288 = scmp.eq.s32.totalorder %s30, 0
      %p289 = por %p287, %p288
      %p290 = scmp.ne.s32.totalorder %s279, %s282
      %p291 = scmp.eq.s32.totalorder %s35, 7
      %p292 = por %p290, %p291
      %p293 = scmp.ne.s32.totalorder %s282, %s283
      %p294 = scmp.eq.s32.totalorder %s35, 0
      %p295 = por %p293, %p294
      %p296 = scmp.ne.s32.totalorder %s282, %s283
      %p297 = scmp.eq.s32.totalorder %s36, 7
      %p298 = por %p296, %p297
      %p300 = scmp.ne.s32.totalorder %s283, %s299
      %p301 = scmp.eq.s32.totalorder %s36, 0
      %p302 = por %p300, %p301
      %p303 = scmp.le.s32.totalorder 1, %s30
      %p304 = scmp.lt.s32.totalorder %s30, 9
      %p305 = pnand %p303, %p304
      %p306 = pneg %p305
      // Predicated region
      $region9: #{tpu_custom_call.1} parent=5 // pred_check
        _
      $region10: #{tpu_custom_call.1} parent=5 // pred_check_branch
        %308 = sbr.rel (%p305) target = $region12
      $region11: #{tpu_custom_call.1} parent=5 // pred_region
        %s309 = ssub.s32 %s30, 1
      $region12: #{tpu_custom_call.1} parent=5 // pred_fallthru
        _
      %p310 = scmp.lt.s32.totalorder %s30, 8
      // Predicated region
      $region13: #{tpu_custom_call.1} parent=5 // pred_check
        %p311 = pneg %p310
      $region14: #{tpu_custom_call.1} parent=5 // pred_check_branch
        %313 = sbr.rel (%p311) target = $region16
      $region15: #{tpu_custom_call.1} parent=5 // pred_region
        // Predicated region
        $region17: #{tpu_custom_call.1} parent=15 // pred_check
          %p314 = pneg %p71
        $region18: #{tpu_custom_call.1} parent=15 // pred_check_branch
          %316 = sbr.rel (%p314) target = $region20
        $region19: #{tpu_custom_call.1} parent=15 // pred_region
          %s317 = sand.u32 %s61, 1
          %s318 = scalar_lea.sflag [#allocation5], %s317
          %s319 = sand.u32 %s61, 1
          %s320 = smul.addr %s319, 16
          %s321 = scalar_lea.vmem [#allocation4], %s320
          %s322 = smul.u32 2, %s37
          %s324 = ssub.s32 256, 256
          %325 = vsyncadd %s318, %s324
          %s326 = smul.addr %s322, 2
          %s327 = sadd.s32 %s39, %s326
          %s328 = smul.addr %s327, 128
          %s329 = scalar_lea.hbm %s0, %s328
          %s330 = sshll.u32 %s321, 4
          %s331 = int_to_ptr.vmem [resolvable:$true] %s330
          %336 = dma.hbm_to_vmem [thread:$0]  %s329, 256, %s331, %s318, 256, 128, 8
        $region20: #{tpu_custom_call.1} parent=15 // pred_fallthru
          _
        // Predicated region
        $region21: #{tpu_custom_call.1} parent=15 // pred_check
          %p337 = pneg %p99
        $region22: #{tpu_custom_call.1} parent=15 // pred_check_branch
          %339 = sbr.rel (%p337) target = $region24
        $region23: #{tpu_custom_call.1} parent=15 // pred_region
          %s340 = sand.u32 %s30, 1
          %s341 = scalar_lea.sflag [#allocation8], %s340
          %s342 = sand.u32 %s89, 1
          %s343 = smul.addr %s342, 128
          %s344 = scalar_lea.vmem [#allocation7], %s343
          %s345 = smul.u32 16, %s38
          %s347 = ssub.s32 2048, 2048
          %348 = vsyncadd %s341, %s347
          %s349 = smul.addr %s345, 2
          %s350 = sadd.s32 %s39, %s349
          %s351 = smul.addr %s350, 128
          %s352 = scalar_lea.hbm %s1, %s351
          %s353 = sshll.u32 %s344, 4
          %s354 = int_to_ptr.vmem [resolvable:$true] %s353
          %359 = dma.hbm_to_vmem [thread:$0]  %s352, 2048, %s354, %s341, 256, 128, 8
        $region24: #{tpu_custom_call.1} parent=15 // pred_fallthru
          _
        // Predicated region
        $region25: #{tpu_custom_call.1} parent=15 // pred_check
          %p360 = pneg %p127
        $region26: #{tpu_custom_call.1} parent=15 // pred_check_branch
          %362 = sbr.rel (%p360) target = $region28
        $region27: #{tpu_custom_call.1} parent=15 // pred_region
          %s363 = sand.u32 %s30, 1
          %s364 = scalar_lea.sflag [#allocation8], %s363
          %s365 = sand.u32 %s117, 1
          %s366 = smul.addr %s365, 128
          %s367 = scalar_lea.vmem [#allocation9], %s366
          %s368 = smul.u32 16, %s38
          %s370 = ssub.s32 2048, 2048
          %371 = vsyncadd %s364, %s370
          %s372 = smul.addr %s368, 2
          %s373 = sadd.s32 %s39, %s372
          %s374 = smul.addr %s373, 128
          %s375 = scalar_lea.hbm %s2, %s374
          %s376 = sshll.u32 %s367, 4
          %s377 = int_to_ptr.vmem [resolvable:$true] %s376
          %382 = dma.hbm_to_vmem [thread:$0]  %s375, 2048, %s377, %s364, 256, 128, 8
        $region28: #{tpu_custom_call.1} parent=15 // pred_fallthru
          _
        // Predicated region
        $region29: #{tpu_custom_call.1} parent=15 // pred_check
          %p383 = pneg %p155
        $region30: #{tpu_custom_call.1} parent=15 // pred_check_branch
          %385 = sbr.rel (%p383) target = $region32
        $region31: #{tpu_custom_call.1} parent=15 // pred_region
          %s386 = sand.u32 %s145, 1
          %s387 = scalar_lea.sflag [#allocation11], %s386
          %s388 = sand.u32 %s145, 1
          %s389 = smul.addr %s388, 128
          %s390 = scalar_lea.vmem [#allocation10], %s389
          %s391 = smul.u32 16, %s38
          %s393 = ssub.s32 2048, 2048
          %394 = vsyncadd %s387, %s393
          %s395 = smul.addr %s391, 2
          %s396 = sadd.s32 %s39, %s395
          %s397 = smul.addr %s396, 128
          %s398 = scalar_lea.hbm %s3, %s397
          %s399 = sshll.u32 %s390, 4
          %s400 = int_to_ptr.vmem [resolvable:$true] %s399
          %405 = dma.hbm_to_vmem [thread:$0]  %s398, 2048, %s400, %s387, 256, 128, 8
        $region32: #{tpu_custom_call.1} parent=15 // pred_fallthru
          _
        // Predicated region
        $region33: #{tpu_custom_call.1} parent=15 // pred_check
          %p406 = pneg %p181
        $region34: #{tpu_custom_call.1} parent=15 // pred_check_branch
          %408 = sbr.rel (%p406) target = $region36
        $region35: #{tpu_custom_call.1} parent=15 // pred_region
          %p409 = scmp.lt.s32.totalorder %s38, 1
          %s410 = scalar_select %p409, %s38, 1
          %s411 = scalar_lea.vmem %s4, %s410
        $region36: #{tpu_custom_call.1} parent=15 // pred_fallthru
          _
        // Predicated region
        $region37: #{tpu_custom_call.1} parent=15 // pred_check
          %p412 = pneg %p207
        $region38: #{tpu_custom_call.1} parent=15 // pred_check_branch
          %414 = sbr.rel (%p412) target = $region40
        $region39: #{tpu_custom_call.1} parent=15 // pred_region
          %p415 = scmp.lt.s32.totalorder %s38, 1
          %s416 = scalar_select %p415, %s38, 1
          %s417 = scalar_lea.vmem %s5, %s416
        $region40: #{tpu_custom_call.1} parent=15 // pred_fallthru
          _
        // Predicated region
        $region41: #{tpu_custom_call.1} parent=15 // pred_check
          %p418 = pneg %p233
        $region42: #{tpu_custom_call.1} parent=15 // pred_check_branch
          %420 = sbr.rel (%p418) target = $region44
        $region43: #{tpu_custom_call.1} parent=15 // pred_region
          %p421 = scmp.lt.s32.totalorder %s38, 1
          %s422 = scalar_select %p421, %s38, 1
          %s423 = scalar_lea.vmem %s6, %s422
        $region44: #{tpu_custom_call.1} parent=15 // pred_fallthru
          _
      $region16: #{tpu_custom_call.1} parent=5 // pred_fallthru
        _
      %p424 = scmp.le.s32.totalorder 1, %s30
      %p425 = scmp.lt.s32.totalorder %s30, 9
      %p426 = pnand %p424, %p425
      %p427 = pneg %p426
      // Predicated region
      $region45: #{tpu_custom_call.1} parent=5 // pred_check
        _
      $region46: #{tpu_custom_call.1} parent=5 // pred_check_branch
        %429 = sbr.rel (%p426) target = $region48
      $region47: #{tpu_custom_call.1} parent=5 // pred_region
        %s430 = ssub.s32 %s30, 1
        %s431 = sand.u32 %s64, 1
        %s432 = scalar_lea.sflag [#allocation5], %s431
        %s433 = sand.u32 %s64, 1
        %s434 = smul.addr %s433, 16
        %s435 = scalar_lea.vmem [#allocation4], %s434
        // Predicated region
        $region49: #{tpu_custom_call.1} parent=47 // pred_check
          %p436 = pneg %p77
        $region50: #{tpu_custom_call.1} parent=47 // pred_check_branch
          %438 = sbr.rel (%p436) target = $region52
        $region51: #{tpu_custom_call.1} parent=47 // pred_region
          %439 = dma.done %s432, 256
        $region52: #{tpu_custom_call.1} parent=47 // pred_fallthru
          _
        %s440 = sand.u32 %s35, 1
        %s441 = scalar_lea.sflag [#allocation8], %s440
        %s442 = sand.u32 %s92, 1
        %s443 = smul.addr %s442, 128
        %s444 = scalar_lea.vmem [#allocation7], %s443
        // Predicated region
        $region53: #{tpu_custom_call.1} parent=47 // pred_check
          %p445 = pneg %p105
        $region54: #{tpu_custom_call.1} parent=47 // pred_check_branch
          %447 = sbr.rel (%p445) target = $region56
        $region55: #{tpu_custom_call.1} parent=47 // pred_region
          %448 = dma.done %s441, 2048
        $region56: #{tpu_custom_call.1} parent=47 // pred_fallthru
          _
        %s449 = sand.u32 %s35, 1
        %s450 = scalar_lea.sflag [#allocation8], %s449
        %s451 = sand.u32 %s120, 1
        %s452 = smul.addr %s451, 128
        %s453 = scalar_lea.vmem [#allocation9], %s452
        // Predicated region
        $region57: #{tpu_custom_call.1} parent=47 // pred_check
          %p454 = pneg %p133
        $region58: #{tpu_custom_call.1} parent=47 // pred_check_branch
          %456 = sbr.rel (%p454) target = $region60
        $region59: #{tpu_custom_call.1} parent=47 // pred_region
          %457 = dma.done %s450, 2048
        $region60: #{tpu_custom_call.1} parent=47 // pred_fallthru
          _
        %s458 = sand.u32 %s148, 1
        %s459 = scalar_lea.sflag [#allocation11], %s458
        %s460 = sand.u32 %s148, 1
        %s461 = smul.addr %s460, 128
        %s462 = scalar_lea.vmem [#allocation10], %s461
        // Predicated region
        $region61: #{tpu_custom_call.1} parent=47 // pred_check
          %p463 = pneg %p161
        $region62: #{tpu_custom_call.1} parent=47 // pred_check_branch
          %465 = sbr.rel (%p463) target = $region64
        $region63: #{tpu_custom_call.1} parent=47 // pred_region
          %466 = dma.done %s459, 2048
        $region64: #{tpu_custom_call.1} parent=47 // pred_fallthru
          _
        %s467 = sand.u32 %s64, 1
        %s468 = scalar_lea.sflag [#allocation5], %s467
        %s469 = sand.u32 %s64, 1
        %s470 = smul.addr %s469, 16
        %s471 = scalar_lea.vmem [#allocation4], %s470
        %p472 = pneg %p77
        %p473 = pneg %p74
        %s474 = sand.u32 %s35, 1
        %s475 = scalar_lea.sflag [#allocation8], %s474
        %s476 = sand.u32 %s92, 1
        %s477 = smul.addr %s476, 128
        %s478 = scalar_lea.vmem [#allocation7], %s477
        %p479 = pneg %p105
        %p480 = pneg %p102
        %s481 = sand.u32 %s35, 1
        %s482 = scalar_lea.sflag [#allocation8], %s481
        %s483 = sand.u32 %s120, 1
        %s484 = smul.addr %s483, 128
        %s485 = scalar_lea.vmem [#allocation9], %s484
        %p486 = pneg %p133
        %p487 = pneg %p130
        %s488 = sand.u32 %s148, 1
        %s489 = scalar_lea.sflag [#allocation11], %s488
        %s490 = sand.u32 %s148, 1
        %s491 = smul.addr %s490, 128
        %s492 = scalar_lea.vmem [#allocation10], %s491
        %p493 = pneg %p161
        %p494 = pneg %p158
        %p495 = scmp.lt.s32.totalorder %s41, 1
        %s496 = scalar_select %p495, %s41, 1
        %s497 = scalar_lea.vmem %s4, %s496
        %p498 = pneg %p187
        %p499 = pneg %p184
        %p500 = scmp.lt.s32.totalorder %s41, 1
        %s501 = scalar_select %p500, %s41, 1
        %s502 = scalar_lea.vmem %s5, %s501
        %p503 = pneg %p213
        %p504 = pneg %p210
        %p505 = scmp.lt.s32.totalorder %s41, 1
        %s506 = scalar_select %p505, %s41, 1
        %s507 = scalar_lea.vmem %s6, %s506
        %p508 = pneg %p239
        %p509 = pneg %p236
        %p510 = pneg %p267
        %p511 = pneg %p264
        %s512 = sand.u32 %s254, 1
        %s513 = scalar_lea.sflag [#allocation6], %s512
        %s514 = sand.u32 %s254, 1
        %s515 = smul.addr %s514, 16
        %s516 = scalar_lea.vmem [#allocation12], %s515
        %p517 = pneg %p295
        %p518 = pneg %p292
        %s519 = sand.u32 %s282, 1
        %s520 = scalar_lea.sflag [#allocation14], %s519
        %s521 = sand.u32 %s282, 1
        %s522 = smul.addr %s521, 8
        %s523 = scalar_lea.vmem [#allocation13], %s522
        %s524 = smul.u32 2, %s40
        %s525 = smul.u32 16, %s41
        %s526 = smul.u32 16, %s41
        %s527 = smul.u32 16, %s41
        %p528 = scmp.lt.s32.totalorder %s41, 1
        %s529 = scalar_select %p528, %s41, 1
        %s530 = scalar_lea.vmem %s4, %s529
        %p531 = scmp.lt.s32.totalorder %s41, 1
        %s532 = scalar_select %p531, %s41, 1
        %s533 = scalar_lea.vmem %s5, %s532
        %p534 = scmp.lt.s32.totalorder %s41, 1
        %s535 = scalar_select %p534, %s41, 1
        %s536 = scalar_lea.vmem %s6, %s535
        %s537 = smul.u32 2, %s40
        %p538 = scmp.eq.s32.totalorder %s42, 0
        // Predicated region
        $region65: #{tpu_custom_call.1} parent=47 // pred_check
          %p539 = pneg %p538
        $region66: #{tpu_custom_call.1} parent=47 // pred_check_branch
          %541 = sbr.rel (%p539) target = $region68
        $region67: #{tpu_custom_call.1} parent=47 // pred_region
          %542 = vst [vmem:[#allocation2] sm:$0xff] 0.0
          %543 = vst [vmem:[#allocation2 + $0x8] sm:$0xff] 0.0
          %s544 = scalar_lea.smem [#allocation3], 0
          %545 = sst [smem:[%s544]] 0.0
        $region68: #{tpu_custom_call.1} parent=47 // pred_fallthru
          _
        %v546 = vld [vmem:[%s444] sm:$0xff]
        %v547 = vld [vmem:[%s444 + $0x8] sm:$0xff]
        %v548 = vld [vmem:[%s444 + $0x10] sm:$0xff]
        %v549 = vld [vmem:[%s444 + $0x18] sm:$0xff]
        %v550 = vld [vmem:[%s444 + $0x20] sm:$0xff]
        %v551 = vld [vmem:[%s444 + $0x28] sm:$0xff]
        %v552 = vld [vmem:[%s444 + $0x30] sm:$0xff]
        %v553 = vld [vmem:[%s444 + $0x38] sm:$0xff]
        %v554 = vld [vmem:[%s444 + $0x40] sm:$0xff]
        %v555 = vld [vmem:[%s444 + $0x48] sm:$0xff]
        %v556 = vld [vmem:[%s444 + $0x50] sm:$0xff]
        %v557 = vld [vmem:[%s444 + $0x58] sm:$0xff]
        %v558 = vld [vmem:[%s444 + $0x60] sm:$0xff]
        %v559 = vld [vmem:[%s444 + $0x68] sm:$0xff]
        %v560 = vld [vmem:[%s444 + $0x70] sm:$0xff]
        %v561 = vld [vmem:[%s444 + $0x78] sm:$0xff]
        %v562 = vld [vmem:[%s453] sm:$0xff]
        %v563 = vld [vmem:[%s453 + $0x8] sm:$0xff]
        %v564 = vld [vmem:[%s453 + $0x10] sm:$0xff]
        %v565 = vld [vmem:[%s453 + $0x18] sm:$0xff]
        %v566 = vld [vmem:[%s453 + $0x20] sm:$0xff]
        %v567 = vld [vmem:[%s453 + $0x28] sm:$0xff]
        %v568 = vld [vmem:[%s453 + $0x30] sm:$0xff]
        %v569 = vld [vmem:[%s453 + $0x38] sm:$0xff]
        %v570 = vld [vmem:[%s453 + $0x40] sm:$0xff]
        %v571 = vld [vmem:[%s453 + $0x48] sm:$0xff]
        %v572 = vld [vmem:[%s453 + $0x50] sm:$0xff]
        %v573 = vld [vmem:[%s453 + $0x58] sm:$0xff]
        %v574 = vld [vmem:[%s453 + $0x60] sm:$0xff]
        %v575 = vld [vmem:[%s453 + $0x68] sm:$0xff]
        %v576 = vld [vmem:[%s453 + $0x70] sm:$0xff]
        %v577 = vld [vmem:[%s453 + $0x78] sm:$0xff]
        %v578 = vmax.f32 %v562, 0.0
        %v579 = vmax.f32 %v563, 0.0
        %v580 = vmax.f32 %v564, 0.0
        %v581 = vmax.f32 %v565, 0.0
        %v582 = vmax.f32 %v566, 0.0
        %v583 = vmax.f32 %v567, 0.0
        %v584 = vmax.f32 %v568, 0.0
        %v585 = vmax.f32 %v569, 0.0
        %v586 = vmax.f32 %v570, 0.0
        %v587 = vmax.f32 %v571, 0.0
        %v588 = vmax.f32 %v572, 0.0
        %v589 = vmax.f32 %v573, 0.0
        %v590 = vmax.f32 %v574, 0.0
        %v591 = vmax.f32 %v575, 0.0
        %v592 = vmax.f32 %v576, 0.0
        %v593 = vmax.f32 %v577, 0.0
        %v594 = vand.u32 2147483647, %v562
        %v595 = vand.u32 2147483647, %v563
        %v596 = vand.u32 2147483647, %v564
        %v597 = vand.u32 2147483647, %v565
        %v598 = vand.u32 2147483647, %v566
        %v599 = vand.u32 2147483647, %v567
        %v600 = vand.u32 2147483647, %v568
        %v601 = vand.u32 2147483647, %v569
        %v602 = vand.u32 2147483647, %v570
        %v603 = vand.u32 2147483647, %v571
        %v604 = vand.u32 2147483647, %v572
        %v605 = vand.u32 2147483647, %v573
        %v606 = vand.u32 2147483647, %v574
        %v607 = vand.u32 2147483647, %v575
        %v608 = vand.u32 2147483647, %v576
        %v609 = vand.u32 2147483647, %v577
        %v610 = vsub.f32 0.0, %v594
        %v611 = vsub.f32 0.0, %v595
        %v612 = vsub.f32 0.0, %v596
        %v613 = vsub.f32 0.0, %v597
        %v614 = vsub.f32 0.0, %v598
        %v615 = vsub.f32 0.0, %v599
        %v616 = vsub.f32 0.0, %v600
        %v617 = vsub.f32 0.0, %v601
        %v618 = vsub.f32 0.0, %v602
        %v619 = vsub.f32 0.0, %v603
        %v620 = vsub.f32 0.0, %v604
        %v621 = vsub.f32 0.0, %v605
        %v622 = vsub.f32 0.0, %v606
        %v623 = vsub.f32 0.0, %v607
        %v624 = vsub.f32 0.0, %v608
        %v625 = vsub.f32 0.0, %v609
        %v626 = vmul.f32 %v610, 1.442695
        %v627 = vpow.pop %v626
        %v628 = vmul.f32 %v611, 1.442695
        %v629 = vpow.pop %v628
        %v630 = vmul.f32 %v612, 1.442695
        %v631 = vpow.pop %v630
        %v632 = vmul.f32 %v613, 1.442695
        %v633 = vpow.pop %v632
        %v634 = vmul.f32 %v614, 1.442695
        %v635 = vpow.pop %v634
        %v636 = vmul.f32 %v615, 1.442695
        %v637 = vpow.pop %v636
        %v638 = vmul.f32 %v616, 1.442695
        %v639 = vpow.pop %v638
        %v640 = vmul.f32 %v617, 1.442695
        %v641 = vpow.pop %v640
        %v642 = vmul.f32 %v618, 1.442695
        %v643 = vpow.pop %v642
        %v644 = vmul.f32 %v619, 1.442695
        %v645 = vpow.pop %v644
        %v646 = vmul.f32 %v620, 1.442695
        %v647 = vpow.pop %v646
        %v648 = vmul.f32 %v621, 1.442695
        %v649 = vpow.pop %v648
        %v650 = vmul.f32 %v622, 1.442695
        %v651 = vpow.pop %v650
        %v652 = vmul.f32 %v623, 1.442695
        %v653 = vpow.pop %v652
        %v654 = vmul.f32 %v624, 1.442695
        %v655 = vpow.pop %v654
        %v656 = vmul.f32 %v625, 1.442695
        %v657 = vpow.pop %v656
        %v658 = vadd.f32 %v627, 1.0
        %v659 = vlog2.pop %v658
        %v660 = vmul.f32 %v659, 0.6931472
        %v661 = vmul.f32 -0.5, %v627
        %v662 = vadd.f32 %v661, 1.0
        %v663 = vmul.f32 %v662, %v627
        %v664 = vand.u32 2147483647, %v627
        %vm665 = vcmp.lt.f32.partialorder %v664, 0.0004427343
        %v666 = vsel %vm665, %v663, %v660
        %v667 = vadd.f32 %v629, 1.0
        %v668 = vlog2.pop %v667
        %v669 = vmul.f32 %v668, 0.6931472
        %v670 = vmul.f32 -0.5, %v629
        %v671 = vadd.f32 %v670, 1.0
        %v672 = vmul.f32 %v671, %v629
        %v673 = vand.u32 2147483647, %v629
        %vm674 = vcmp.lt.f32.partialorder %v673, 0.0004427343
        %v675 = vsel %vm674, %v672, %v669
        %v676 = vadd.f32 %v631, 1.0
        %v677 = vlog2.pop %v676
        %v678 = vmul.f32 %v677, 0.6931472
        %v679 = vmul.f32 -0.5, %v631
        %v680 = vadd.f32 %v679, 1.0
        %v681 = vmul.f32 %v680, %v631
        %v682 = vand.u32 2147483647, %v631
        %vm683 = vcmp.lt.f32.partialorder %v682, 0.0004427343
        %v684 = vsel %vm683, %v681, %v678
        %v685 = vadd.f32 %v633, 1.0
        %v686 = vlog2.pop %v685
        %v687 = vmul.f32 %v686, 0.6931472
        %v688 = vmul.f32 -0.5, %v633
        %v689 = vadd.f32 %v688, 1.0
        %v690 = vmul.f32 %v689, %v633
        %v691 = vand.u32 2147483647, %v633
        %vm692 = vcmp.lt.f32.partialorder %v691, 0.0004427343
        %v693 = vsel %vm692, %v690, %v687
        %v694 = vadd.f32 %v635, 1.0
        %v695 = vlog2.pop %v694
        %v696 = vmul.f32 %v695, 0.6931472
        %v697 = vmul.f32 -0.5, %v635
        %v698 = vadd.f32 %v697, 1.0
        %v699 = vmul.f32 %v698, %v635
        %v700 = vand.u32 2147483647, %v635
        %vm701 = vcmp.lt.f32.partialorder %v700, 0.0004427343
        %v702 = vsel %vm701, %v699, %v696
        %v703 = vadd.f32 %v637, 1.0
        %v704 = vlog2.pop %v703
        %v705 = vmul.f32 %v704, 0.6931472
        %v706 = vmul.f32 -0.5, %v637
        %v707 = vadd.f32 %v706, 1.0
        %v708 = vmul.f32 %v707, %v637
        %v709 = vand.u32 2147483647, %v637
        %vm710 = vcmp.lt.f32.partialorder %v709, 0.0004427343
        %v711 = vsel %vm710, %v708, %v705
        %v712 = vadd.f32 %v639, 1.0
        %v713 = vlog2.pop %v712
        %v714 = vmul.f32 %v713, 0.6931472
        %v715 = vmul.f32 -0.5, %v639
        %v716 = vadd.f32 %v715, 1.0
        %v717 = vmul.f32 %v716, %v639
        %v718 = vand.u32 2147483647, %v639
        %vm719 = vcmp.lt.f32.partialorder %v718, 0.0004427343
        %v720 = vsel %vm719, %v717, %v714
        %v721 = vadd.f32 %v641, 1.0
        %v722 = vlog2.pop %v721
        %v723 = vmul.f32 %v722, 0.6931472
        %v724 = vmul.f32 -0.5, %v641
        %v725 = vadd.f32 %v724, 1.0
        %v726 = vmul.f32 %v725, %v641
        %v727 = vand.u32 2147483647, %v641
        %vm728 = vcmp.lt.f32.partialorder %v727, 0.0004427343
        %v729 = vsel %vm728, %v726, %v723
        %v730 = vadd.f32 %v643, 1.0
        %v731 = vlog2.pop %v730
        %v732 = vmul.f32 %v731, 0.6931472
        %v733 = vmul.f32 -0.5, %v643
        %v734 = vadd.f32 %v733, 1.0
        %v735 = vmul.f32 %v734, %v643
        %v736 = vand.u32 2147483647, %v643
        %vm737 = vcmp.lt.f32.partialorder %v736, 0.0004427343
        %v738 = vsel %vm737, %v735, %v732
        %v739 = vadd.f32 %v645, 1.0
        %v740 = vlog2.pop %v739
        %v741 = vmul.f32 %v740, 0.6931472
        %v742 = vmul.f32 -0.5, %v645
        %v743 = vadd.f32 %v742, 1.0
        %v744 = vmul.f32 %v743, %v645
        %v745 = vand.u32 2147483647, %v645
        %vm746 = vcmp.lt.f32.partialorder %v745, 0.0004427343
        %v747 = vsel %vm746, %v744, %v741
        %v748 = vadd.f32 %v647, 1.0
        %v749 = vlog2.pop %v748
        %v750 = vmul.f32 %v749, 0.6931472
        %v751 = vmul.f32 -0.5, %v647
        %v752 = vadd.f32 %v751, 1.0
        %v753 = vmul.f32 %v752, %v647
        %v754 = vand.u32 2147483647, %v647
        %vm755 = vcmp.lt.f32.partialorder %v754, 0.0004427343
        %v756 = vsel %vm755, %v753, %v750
        %v757 = vadd.f32 %v649, 1.0
        %v758 = vlog2.pop %v757
        %v759 = vmul.f32 %v758, 0.6931472
        %v760 = vmul.f32 -0.5, %v649
        %v761 = vadd.f32 %v760, 1.0
        %v762 = vmul.f32 %v761, %v649
        %v763 = vand.u32 2147483647, %v649
        %vm764 = vcmp.lt.f32.partialorder %v763, 0.0004427343
        %v765 = vsel %vm764, %v762, %v759
        %v766 = vadd.f32 %v651, 1.0
        %v767 = vlog2.pop %v766
        %v768 = vmul.f32 %v767, 0.6931472
        %v769 = vmul.f32 -0.5, %v651
        %v770 = vadd.f32 %v769, 1.0
        %v771 = vmul.f32 %v770, %v651
        %v772 = vand.u32 2147483647, %v651
        %vm773 = vcmp.lt.f32.partialorder %v772, 0.0004427343
        %v774 = vsel %vm773, %v771, %v768
        %v775 = vadd.f32 %v653, 1.0
        %v776 = vlog2.pop %v775
        %v777 = vmul.f32 %v776, 0.6931472
        %v778 = vmul.f32 -0.5, %v653
        %v779 = vadd.f32 %v778, 1.0
        %v780 = vmul.f32 %v779, %v653
        %v781 = vand.u32 2147483647, %v653
        %vm782 = vcmp.lt.f32.partialorder %v781, 0.0004427343
        %v783 = vsel %vm782, %v780, %v777
        %v784 = vadd.f32 %v655, 1.0
        %v785 = vlog2.pop %v784
        %v786 = vmul.f32 %v785, 0.6931472
        %v787 = vmul.f32 -0.5, %v655
        %v788 = vadd.f32 %v787, 1.0
        %v789 = vmul.f32 %v788, %v655
        %v790 = vand.u32 2147483647, %v655
        %vm791 = vcmp.lt.f32.partialorder %v790, 0.0004427343
        %v792 = vsel %vm791, %v789, %v786
        %v793 = vadd.f32 %v657, 1.0
        %v794 = vlog2.pop %v793
        %v795 = vmul.f32 %v794, 0.6931472
        %v796 = vmul.f32 -0.5, %v657
        %v797 = vadd.f32 %v796, 1.0
        %v798 = vmul.f32 %v797, %v657
        %v799 = vand.u32 2147483647, %v657
        %vm800 = vcmp.lt.f32.partialorder %v799, 0.0004427343
        %v801 = vsel %vm800, %v798, %v795
        %v802 = vadd.f32 %v578, %v666
        %v803 = vadd.f32 %v579, %v675
        %v804 = vadd.f32 %v580, %v684
        %v805 = vadd.f32 %v581, %v693
        %v806 = vadd.f32 %v582, %v702
        %v807 = vadd.f32 %v583, %v711
        %v808 = vadd.f32 %v584, %v720
        %v809 = vadd.f32 %v585, %v729
        %v810 = vadd.f32 %v586, %v738
        %v811 = vadd.f32 %v587, %v747
        %v812 = vadd.f32 %v588, %v756
        %v813 = vadd.f32 %v589, %v765
        %v814 = vadd.f32 %v590, %v774
        %v815 = vadd.f32 %v591, %v783
        %v816 = vadd.f32 %v592, %v792
        %v817 = vadd.f32 %v593, %v801
        %v818 = vld [vmem:[%s462] sm:$0xff]
        %v819 = vld [vmem:[%s462 + $0x8] sm:$0xff]
        %v820 = vld [vmem:[%s462 + $0x10] sm:$0xff]
        %v821 = vld [vmem:[%s462 + $0x18] sm:$0xff]
        %v822 = vld [vmem:[%s462 + $0x20] sm:$0xff]
        %v823 = vld [vmem:[%s462 + $0x28] sm:$0xff]
        %v824 = vld [vmem:[%s462 + $0x30] sm:$0xff]
        %v825 = vld [vmem:[%s462 + $0x38] sm:$0xff]
        %v826 = vld [vmem:[%s462 + $0x40] sm:$0xff]
        %v827 = vld [vmem:[%s462 + $0x48] sm:$0xff]
        %v828 = vld [vmem:[%s462 + $0x50] sm:$0xff]
        %v829 = vld [vmem:[%s462 + $0x58] sm:$0xff]
        %v830 = vld [vmem:[%s462 + $0x60] sm:$0xff]
        %v831 = vld [vmem:[%s462 + $0x68] sm:$0xff]
        %v832 = vld [vmem:[%s462 + $0x70] sm:$0xff]
        %v833 = vld [vmem:[%s462 + $0x78] sm:$0xff]
        %v834 = vmul.f32 %v802, %v818
        %v835 = vmul.f32 %v803, %v819
        %v836 = vmul.f32 %v804, %v820
        %v837 = vmul.f32 %v805, %v821
        %v838 = vmul.f32 %v806, %v822
        %v839 = vmul.f32 %v807, %v823
        %v840 = vmul.f32 %v808, %v824
        %v841 = vmul.f32 %v809, %v825
        %v842 = vmul.f32 %v810, %v826
        %v843 = vmul.f32 %v811, %v827
        %v844 = vmul.f32 %v812, %v828
        %v845 = vmul.f32 %v813, %v829
        %v846 = vmul.f32 %v814, %v830
        %v847 = vmul.f32 %v815, %v831
        %v848 = vmul.f32 %v816, %v832
        %v849 = vmul.f32 %v817, %v833
        %v850 = vadd.f32 %v546, %v834
        %v851 = vadd.f32 %v547, %v835
        %v852 = vadd.f32 %v548, %v836
        %v853 = vadd.f32 %v549, %v837
        %v854 = vadd.f32 %v550, %v838
        %v855 = vadd.f32 %v551, %v839
        %v856 = vadd.f32 %v552, %v840
        %v857 = vadd.f32 %v553, %v841
        %v858 = vadd.f32 %v554, %v842
        %v859 = vadd.f32 %v555, %v843
        %v860 = vadd.f32 %v556, %v844
        %v861 = vadd.f32 %v557, %v845
        %v862 = vadd.f32 %v558, %v846
        %v863 = vadd.f32 %v559, %v847
        %v864 = vadd.f32 %v560, %v848
        %v865 = vadd.f32 %v561, %v849
        %v866 = vld [vmem:[#allocation2] sm:$0xff]
        %v867 = vld [vmem:[#allocation2 + $0x8] sm:$0xff]
        %v868 = vld [vmem:[%s435] sm:$0xff]
        %v869 = vld [vmem:[%s435 + $0x8] sm:$0xff]
        %870 = vmatprep.subr.mxu0 0.0
        %871 = vmatpush1.xpose.msra.mxu0 %v850
        %872 = vmatprep.subr.mxu0 0.0
        %873 = vmatpush1.xpose.msra.mxu0 %v851
        %874 = vmatprep.subr.mxu0 0.0
        %875 = vmatpush1.xpose.msra.mxu0 %v852
        %876 = vmatprep.subr.mxu0 0.0
        %877 = vmatpush1.xpose.msra.mxu0 %v853
        %878 = vmatprep.subr.mxu0 0.0
        %879 = vmatpush1.xpose.msra.mxu0 %v854
        %880 = vmatprep.subr.mxu0 0.0
        %881 = vmatpush1.xpose.msra.mxu0 %v855
        %882 = vmatprep.subr.mxu0 0.0
        %883 = vmatpush1.xpose.msra.mxu0 %v856
        %884 = vmatprep.subr.mxu0 0.0
        %885 = vmatpush1.xpose.msra.mxu0 %v857
        %886 = vmatprep.subr.mxu0 0.0
        %887 = vmatpush1.xpose.msra.mxu0 %v858
        %888 = vmatprep.subr.mxu0 0.0
        %889 = vmatpush1.xpose.msra.mxu0 %v859
        %890 = vmatprep.subr.mxu0 0.0
        %891 = vmatpush1.xpose.msra.mxu0 %v860
        %892 = vmatprep.subr.mxu0 0.0
        %893 = vmatpush1.xpose.msra.mxu0 %v861
        %894 = vmatprep.subr.mxu0 0.0
        %895 = vmatpush1.xpose.msra.mxu0 %v862
        %896 = vmatprep.subr.mxu0 0.0
        %897 = vmatpush1.xpose.msra.mxu0 %v863
        %898 = vmatprep.subr.mxu0 0.0
        %899 = vmatpush1.xpose.msra.mxu0 %v864
        %900 = vmatprep.subr.mxu0 0.0
        %901 = vmatpush1.xpose.msra.mxu0 %v865
        %902 = vmatprep.subr.mxu0 0.0
        %903 = vmatpush1.xpose.msra.mxu0 0.0
        %904 = vmatprep.subr.mxu0 0.0
        %905 = vmatpush1.xpose.msra.mxu0 0.0
        %906 = vmatprep.subr.mxu0 0.0
        %907 = vmatpush1.xpose.msra.mxu0 0.0
        %908 = vmatprep.subr.mxu0 0.0
        %909 = vmatpush1.xpose.msra.mxu0 0.0
        %910 = vmatprep.subr.mxu0 0.0
        %911 = vmatpush1.xpose.msra.mxu0 0.0
        %912 = vmatprep.subr.mxu0 0.0
        %913 = vmatpush1.xpose.msra.mxu0 0.0
        %914 = vmatprep.subr.mxu0 0.0
        %915 = vmatpush1.xpose.msra.mxu0 0.0
        %916 = vmatprep.subr.mxu0 0.0
        %917 = vmatpush1.xpose.msra.mxu0 0.0
        %918 = vmatprep.subr.mxu0 0.0
        %919 = vmatpush1.xpose.msra.mxu0 0.0
        %920 = vmatprep.subr.mxu0 0.0
        %921 = vmatpush1.xpose.msra.mxu0 0.0
        %922 = vmatprep.subr.mxu0 0.0
        %923 = vmatpush1.xpose.msra.mxu0 0.0
        %924 = vmatprep.subr.mxu0 0.0
        %925 = vmatpush1.xpose.msra.mxu0 0.0
        %926 = vmatprep.subr.mxu0 0.0
        %927 = vmatpush1.xpose.msra.mxu0 0.0
        %928 = vmatprep.subr.mxu0 0.0
        %929 = vmatpush1.xpose.msra.mxu0 0.0
        %930 = vmatprep.subr.mxu0 0.0
        %931 = vmatpush1.xpose.msra.mxu0 0.0
        %932 = vmatprep.subr.mxu0 0.0
        %933 = vmatpush1.xpose.msra.mxu0 0.0
        %934 = vmatprep.mubr.f32.mxu0 0.0
        %935 = vmatmul.mubr.f32.gmra.mrb[0].mxu0 %v868
        %v936 = vpop.f32.mrb[0].mxu0
        %v937 = vadd.f32 0.0, %v936
        %v938 = vpop.f32.mrb[0].mxu0
        %939 = vmatprep.mubr.f32.mxu0 0.0
        %940 = vmatmul.mubr.f32.gmra.mrb[0].mxu0 %v869
        %v941 = vpop.f32.mrb[0].mxu0
        %v942 = vadd.f32 0.0, %v941
        %v943 = vpop.f32.mrb[0].mxu0
        %944 = vdwg.mxu0
        %v945 = vadd.f32 %v866, %v937
        %v946 = vadd.f32 %v867, %v942
        %947 = vst [vmem:[#allocation2] sm:$0xff] %v945
        %948 = vst [vmem:[#allocation2 + $0x8] sm:$0xff] %v946
        %p949 = scmp.eq.s32.totalorder %s40, 0
        // Predicated region
        $region69: #{tpu_custom_call.1} parent=47 // pred_check
          %p950 = pneg %p949
        $region70: #{tpu_custom_call.1} parent=47 // pred_check_branch
          %952 = sbr.rel (%p950) target = $region72
        $region71: #{tpu_custom_call.1} parent=47 // pred_region
          %v953 = vlaneseq
          %v954 = vshrl.u32 %v953, 7
          %v955 = vadd.s32 %v954, 8
          %v956 = vadd.s32 %v954, 16
          %v957 = vadd.s32 %v954, 24
          %v958 = vadd.s32 %v954, 32
          %v959 = vadd.s32 %v954, 40
          %v960 = vadd.s32 %v954, 48
          %v961 = vadd.s32 %v954, 56
          %v962 = vadd.s32 %v954, 64
          %v963 = vadd.s32 %v954, 72
          %v964 = vadd.s32 %v954, 80
          %v965 = vadd.s32 %v954, 88
          %v966 = vadd.s32 %v954, 96
          %v967 = vadd.s32 %v954, 104
          %v968 = vadd.s32 %v954, 112
          %v969 = vadd.s32 %v954, 120
          %s970 = smul.u32 %s41, 128
          %v971 = vstv %s970
          %v972 = vadd.s32 %v954, %v971
          %v973 = vadd.s32 %v955, %v971
          %v974 = vadd.s32 %v956, %v971
          %v975 = vadd.s32 %v957, %v971
          %v976 = vadd.s32 %v958, %v971
          %v977 = vadd.s32 %v959, %v971
          %v978 = vadd.s32 %v960, %v971
          %v979 = vadd.s32 %v961, %v971
          %v980 = vadd.s32 %v962, %v971
          %v981 = vadd.s32 %v963, %v971
          %v982 = vadd.s32 %v964, %v971
          %v983 = vadd.s32 %v965, %v971
          %v984 = vadd.s32 %v966, %v971
          %v985 = vadd.s32 %v967, %v971
          %v986 = vadd.s32 %v968, %v971
          %v987 = vadd.s32 %v969, %v971
          %v988 = vlaneseq
          %v989 = vand.u32 %v988, 127
          %s990 = smul.u32 %s42, 128
          %v991 = vstv %s990
          %v992 = vadd.s32 %v989, %v991
          %vm993 = vcmp.lt.s32.totalorder %v972, 160
          %vm994 = vcmp.lt.s32.totalorder %v973, 160
          %vm995 = vcmp.lt.s32.totalorder %v974, 160
          %vm996 = vcmp.lt.s32.totalorder %v975, 160
          %vm997 = vcmp.lt.s32.totalorder %v976, 160
          %vm998 = vcmp.lt.s32.totalorder %v977, 160
          %vm999 = vcmp.lt.s32.totalorder %v978, 160
          %vm1000 = vcmp.lt.s32.totalorder %v979, 160
          %vm1001 = vcmp.lt.s32.totalorder %v980, 160
          %vm1002 = vcmp.lt.s32.totalorder %v981, 160
          %vm1003 = vcmp.lt.s32.totalorder %v982, 160
          %vm1004 = vcmp.lt.s32.totalorder %v983, 160
          %vm1005 = vcmp.lt.s32.totalorder %v984, 160
          %vm1006 = vcmp.lt.s32.totalorder %v985, 160
          %vm1007 = vcmp.lt.s32.totalorder %v986, 160
          %vm1008 = vcmp.lt.s32.totalorder %v987, 160
          %vm1009 = vcmp.lt.s32.totalorder %v992, 200
          %vm1010 = vmand %vm993, %vm1009
          %vm1011 = vmand %vm994, %vm1009
          %vm1012 = vmand %vm995, %vm1009
          %vm1013 = vmand %vm996, %vm1009
          %vm1014 = vmand %vm997, %vm1009
          %vm1015 = vmand %vm998, %vm1009
          %vm1016 = vmand %vm999, %vm1009
          %vm1017 = vmand %vm1000, %vm1009
          %vm1018 = vmand %vm1001, %vm1009
          %vm1019 = vmand %vm1002, %vm1009
          %vm1020 = vmand %vm1003, %vm1009
          %vm1021 = vmand %vm1004, %vm1009
          %vm1022 = vmand %vm1005, %vm1009
          %vm1023 = vmand %vm1006, %vm1009
          %vm1024 = vmand %vm1007, %vm1009
          %vm1025 = vmand %vm1008, %vm1009
          %s1026 = sld [smem:[#allocation3]]
          %v1027 = vlog2.pop %v802
          %v1028 = vmul.f32 %v1027, 0.6931472
          %v1029 = vlog2.pop %v803
          %v1030 = vmul.f32 %v1029, 0.6931472
          %v1031 = vlog2.pop %v804
          %v1032 = vmul.f32 %v1031, 0.6931472
          %v1033 = vlog2.pop %v805
          %v1034 = vmul.f32 %v1033, 0.6931472
          %v1035 = vlog2.pop %v806
          %v1036 = vmul.f32 %v1035, 0.6931472
          %v1037 = vlog2.pop %v807
          %v1038 = vmul.f32 %v1037, 0.6931472
          %v1039 = vlog2.pop %v808
          %v1040 = vmul.f32 %v1039, 0.6931472
          %v1041 = vlog2.pop %v809
          %v1042 = vmul.f32 %v1041, 0.6931472
          %v1043 = vlog2.pop %v810
          %v1044 = vmul.f32 %v1043, 0.6931472
          %v1045 = vlog2.pop %v811
          %v1046 = vmul.f32 %v1045, 0.6931472
          %v1047 = vlog2.pop %v812
          %v1048 = vmul.f32 %v1047, 0.6931472
          %v1049 = vlog2.pop %v813
          %v1050 = vmul.f32 %v1049, 0.6931472
          %v1051 = vlog2.pop %v814
          %v1052 = vmul.f32 %v1051, 0.6931472
          %v1053 = vlog2.pop %v815
          %v1054 = vmul.f32 %v1053, 0.6931472
          %v1055 = vlog2.pop %v816
          %v1056 = vmul.f32 %v1055, 0.6931472
          %v1057 = vlog2.pop %v817
          %v1058 = vmul.f32 %v1057, 0.6931472
          %v1059 = vmul.f32 %v1028, 2.0
          %v1060 = vmul.f32 %v1030, 2.0
          %v1061 = vmul.f32 %v1032, 2.0
          %v1062 = vmul.f32 %v1034, 2.0
          %v1063 = vmul.f32 %v1036, 2.0
          %v1064 = vmul.f32 %v1038, 2.0
          %v1065 = vmul.f32 %v1040, 2.0
          %v1066 = vmul.f32 %v1042, 2.0
          %v1067 = vmul.f32 %v1044, 2.0
          %v1068 = vmul.f32 %v1046, 2.0
          %v1069 = vmul.f32 %v1048, 2.0
          %v1070 = vmul.f32 %v1050, 2.0
          %v1071 = vmul.f32 %v1052, 2.0
          %v1072 = vmul.f32 %v1054, 2.0
          %v1073 = vmul.f32 %v1056, 2.0
          %v1074 = vmul.f32 %v1058, 2.0
          %v1075 = vsub.f32 -6.214608, %v1059
          %v1076 = vsub.f32 -6.214608, %v1060
          %v1077 = vsub.f32 -6.214608, %v1061
          %v1078 = vsub.f32 -6.214608, %v1062
          %v1079 = vsub.f32 -6.214608, %v1063
          %v1080 = vsub.f32 -6.214608, %v1064
          %v1081 = vsub.f32 -6.214608, %v1065
          %v1082 = vsub.f32 -6.214608, %v1066
          %v1083 = vsub.f32 -6.214608, %v1067
          %v1084 = vsub.f32 -6.214608, %v1068
          %v1085 = vsub.f32 -6.214608, %v1069
          %v1086 = vsub.f32 -6.214608, %v1070
          %v1087 = vsub.f32 -6.214608, %v1071
          %v1088 = vsub.f32 -6.214608, %v1072
          %v1089 = vsub.f32 -6.214608, %v1073
          %v1090 = vsub.f32 -6.214608, %v1074
          %v1091 = vmul.f32 %v802, %v802
          %v1092 = vmul.f32 %v803, %v803
          %v1093 = vmul.f32 %v804, %v804
          %v1094 = vmul.f32 %v805, %v805
          %v1095 = vmul.f32 %v806, %v806
          %v1096 = vmul.f32 %v807, %v807
          %v1097 = vmul.f32 %v808, %v808
          %v1098 = vmul.f32 %v809, %v809
          %v1099 = vmul.f32 %v810, %v810
          %v1100 = vmul.f32 %v811, %v811
          %v1101 = vmul.f32 %v812, %v812
          %v1102 = vmul.f32 %v813, %v813
          %v1103 = vmul.f32 %v814, %v814
          %v1104 = vmul.f32 %v815, %v815
          %v1105 = vmul.f32 %v816, %v816
          %v1106 = vmul.f32 %v817, %v817
          %v1107 = vmul.f32 %v546, %v546
          %v1108 = vmul.f32 %v547, %v547
          %v1109 = vmul.f32 %v548, %v548
          %v1110 = vmul.f32 %v549, %v549
          %v1111 = vmul.f32 %v550, %v550
          %v1112 = vmul.f32 %v551, %v551
          %v1113 = vmul.f32 %v552, %v552
          %v1114 = vmul.f32 %v553, %v553
          %v1115 = vmul.f32 %v554, %v554
          %v1116 = vmul.f32 %v555, %v555
          %v1117 = vmul.f32 %v556, %v556
          %v1118 = vmul.f32 %v557, %v557
          %v1119 = vmul.f32 %v558, %v558
          %v1120 = vmul.f32 %v559, %v559
          %v1121 = vmul.f32 %v560, %v560
          %v1122 = vmul.f32 %v561, %v561
          %v1123 = vadd.f32 %v1091, %v1107
          %v1124 = vadd.f32 %v1092, %v1108
          %v1125 = vadd.f32 %v1093, %v1109
          %v1126 = vadd.f32 %v1094, %v1110
          %v1127 = vadd.f32 %v1095, %v1111
          %v1128 = vadd.f32 %v1096, %v1112
          %v1129 = vadd.f32 %v1097, %v1113
          %v1130 = vadd.f32 %v1098, %v1114
          %v1131 = vadd.f32 %v1099, %v1115
          %v1132 = vadd.f32 %v1100, %v1116
          %v1133 = vadd.f32 %v1101, %v1117
          %v1134 = vadd.f32 %v1102, %v1118
          %v1135 = vadd.f32 %v1103, %v1119
          %v1136 = vadd.f32 %v1104, %v1120
          %v1137 = vadd.f32 %v1105, %v1121
          %v1138 = vadd.f32 %v1106, %v1122
          %v1139 = vmul.f32 %v1123, 125000.5
          %v1140 = vmul.f32 %v1124, 125000.5
          %v1141 = vmul.f32 %v1125, 125000.5
          %v1142 = vmul.f32 %v1126, 125000.5
          %v1143 = vmul.f32 %v1127, 125000.5
          %v1144 = vmul.f32 %v1128, 125000.5
          %v1145 = vmul.f32 %v1129, 125000.5
          %v1146 = vmul.f32 %v1130, 125000.5
          %v1147 = vmul.f32 %v1131, 125000.5
          %v1148 = vmul.f32 %v1132, 125000.5
          %v1149 = vmul.f32 %v1133, 125000.5
          %v1150 = vmul.f32 %v1134, 125000.5
          %v1151 = vmul.f32 %v1135, 125000.5
          %v1152 = vmul.f32 %v1136, 125000.5
          %v1153 = vmul.f32 %v1137, 125000.5
          %v1154 = vmul.f32 %v1138, 125000.5
          %v1155 = vadd.f32 %v1075, %v1139
          %v1156 = vadd.f32 %v1076, %v1140
          %v1157 = vadd.f32 %v1077, %v1141
          %v1158 = vadd.f32 %v1078, %v1142
          %v1159 = vadd.f32 %v1079, %v1143
          %v1160 = vadd.f32 %v1080, %v1144
          %v1161 = vadd.f32 %v1081, %v1145
          %v1162 = vadd.f32 %v1082, %v1146
          %v1163 = vadd.f32 %v1083, %v1147
          %v1164 = vadd.f32 %v1084, %v1148
          %v1165 = vadd.f32 %v1085, %v1149
          %v1166 = vadd.f32 %v1086, %v1150
          %v1167 = vadd.f32 %v1087, %v1151
          %v1168 = vadd.f32 %v1088, %v1152
          %v1169 = vadd.f32 %v1089, %v1153
          %v1170 = vadd.f32 %v1090, %v1154
          %v1171 = vsub.f32 %v1155, 1.0
          %v1172 = vsub.f32 %v1156, 1.0
          %v1173 = vsub.f32 %v1157, 1.0
          %v1174 = vsub.f32 %v1158, 1.0
          %v1175 = vsub.f32 %v1159, 1.0
          %v1176 = vsub.f32 %v1160, 1.0
          %v1177 = vsub.f32 %v1161, 1.0
          %v1178 = vsub.f32 %v1162, 1.0
          %v1179 = vsub.f32 %v1163, 1.0
          %v1180 = vsub.f32 %v1164, 1.0
          %v1181 = vsub.f32 %v1165, 1.0
          %v1182 = vsub.f32 %v1166, 1.0
          %v1183 = vsub.f32 %v1167, 1.0
          %v1184 = vsub.f32 %v1168, 1.0
          %v1185 = vsub.f32 %v1169, 1.0
          %v1186 = vsub.f32 %v1170, 1.0
          %v1187 = vmul.f32 %v1171, 0.5
          %v1188 = vmul.f32 %v1172, 0.5
          %v1189 = vmul.f32 %v1173, 0.5
          %v1190 = vmul.f32 %v1174, 0.5
          %v1191 = vmul.f32 %v1175, 0.5
          %v1192 = vmul.f32 %v1176, 0.5
          %v1193 = vmul.f32 %v1177, 0.5
          %v1194 = vmul.f32 %v1178, 0.5
          %v1195 = vmul.f32 %v1179, 0.5
          %v1196 = vmul.f32 %v1180, 0.5
          %v1197 = vmul.f32 %v1181, 0.5
          %v1198 = vmul.f32 %v1182, 0.5
          %v1199 = vmul.f32 %v1183, 0.5
          %v1200 = vmul.f32 %v1184, 0.5
          %v1201 = vmul.f32 %v1185, 0.5
          %v1202 = vmul.f32 %v1186, 0.5
          %v1203 = vsel %vm1010, %v1187, 0.0
          %v1204 = vsel %vm1011, %v1188, 0.0
          %v1205 = vsel %vm1012, %v1189, 0.0
          %v1206 = vsel %vm1013, %v1190, 0.0
          %v1207 = vsel %vm1014, %v1191, 0.0
          %v1208 = vsel %vm1015, %v1192, 0.0
          %v1209 = vsel %vm1016, %v1193, 0.0
          %v1210 = vsel %vm1017, %v1194, 0.0
          %v1211 = vsel %vm1018, %v1195, 0.0
          %v1212 = vsel %vm1019, %v1196, 0.0
          %v1213 = vsel %vm1020, %v1197, 0.0
          %v1214 = vsel %vm1021, %v1198, 0.0
          %v1215 = vsel %vm1022, %v1199, 0.0
          %v1216 = vsel %vm1023, %v1200, 0.0
          %v1217 = vsel %vm1024, %v1201, 0.0
          %v1218 = vsel %vm1025, %v1202, 0.0
          %v1219 = vadd.f32 %v1203, %v1204
          %v1220 = vadd.f32 %v1219, %v1205
          %v1221 = vadd.f32 %v1220, %v1206
          %v1222 = vadd.f32 %v1221, %v1207
          %v1223 = vadd.f32 %v1222, %v1208
          %v1224 = vadd.f32 %v1223, %v1209
          %v1225 = vadd.f32 %v1224, %v1210
          %v1226 = vadd.f32 %v1225, %v1211
          %v1227 = vadd.f32 %v1226, %v1212
          %v1228 = vadd.f32 %v1227, %v1213
          %v1229 = vadd.f32 %v1228, %v1214
          %v1230 = vadd.f32 %v1229, %v1215
          %v1231 = vadd.f32 %v1230, %v1216
          %v1232 = vadd.f32 %v1231, %v1217
          %v1233 = vadd.f32 %v1232, %v1218
          %1234 = vadd.xlane.f32.xlu0 %v1233
          %v1235 = vpop.xlane.xlu0 %1234
          %v1236 = vrot.slane %v1235, 4
          %v1237 = vadd.f32 %v1235, %v1236
          %v1238 = vrot.slane %v1237, 2
          %v1239 = vadd.f32 %v1237, %v1238
          %v1240 = vrot.slane %v1239, 1
          %v1241 = vadd.f32 %v1239, %v1240
          %s1242 = vtos %v1241
          %s1243 = sadd.f32 %s1026, %s1242
          %s1244 = scalar_lea.smem [#allocation3], 0
          %1245 = sst [smem:[%s1244]] %s1243
        $region72: #{tpu_custom_call.1} parent=47 // pred_fallthru
          _
        %p1246 = scmp.eq.s32.totalorder %s42, 1
        %p1247 = pnand %p949, %p1246
        %p1248 = pneg %p1247
        // Predicated region
        $region73: #{tpu_custom_call.1} parent=47 // pred_check
          _
        $region74: #{tpu_custom_call.1} parent=47 // pred_check_branch
          %1250 = sbr.rel (%p1247) target = $region76
        $region75: #{tpu_custom_call.1} parent=47 // pred_region
          %v1251 = vlaneseq
          %v1252 = vand.u32 %v1251, 127
          %s1253 = smul.u32 %s41, 128
          %v1254 = vstv %s1253
          %v1255 = vadd.s32 %v1252, %v1254
          %s1256 = sld [smem:[#allocation3]]
          %v1257 = vld [vmem:[%s530] sm:$0x1]
          %v1258 = vld [vmem:[%s533] sm:$0x1]
          %v1259 = vmax.f32 %v1258, 0.0
          %v1260 = vand.u32 2147483647, %v1258
          %v1261 = vsub.f32 0.0, %v1260
          %v1262 = vmul.f32 %v1261, 1.442695
          %v1263 = vpow.pop %v1262
          %v1264 = vadd.f32 %v1263, 1.0
          %v1265 = vlog2.pop %v1264
          %v1266 = vmul.f32 %v1265, 0.6931472
          %v1267 = vmul.f32 -0.5, %v1263
          %v1268 = vadd.f32 %v1267, 1.0
          %v1269 = vmul.f32 %v1268, %v1263
          %v1270 = vand.u32 2147483647, %v1263
          %vm1271 = vcmp.lt.f32.partialorder %v1270, 0.0004427343
          %v1272 = vsel %vm1271, %v1269, %v1266
          %v1273 = vadd.f32 %v1259, %v1272
          %vm1274 = vcmp.lt.s32.totalorder %v1255, 160
          %v1275 = vlog2.pop %v1273
          %v1276 = vmul.f32 %v1275, 0.6931472
          %v1277 = vmul.f32 %v1276, 2.0
          %v1278 = vsub.f32 -6.214608, %v1277
          %v1279 = vmul.f32 %v1273, %v1273
          %v1280 = vmul.f32 %v1257, %v1257
          %v1281 = vadd.f32 %v1279, %v1280
          %v1282 = vmul.f32 %v1281, 125000.5
          %v1283 = vadd.f32 %v1278, %v1282
          %v1284 = vsub.f32 %v1283, 1.0
          %v1285 = vmul.f32 %v1284, 0.5
          %v1286 = vsel %vm1274, %v1285, 0.0
          %vm1287 = vcmask 1040384
          %v1288 = vsel %vm1287, %v1286, 0.0
          %1289 = vadd.xlane.f32.xlu0 %v1288
          %v1290 = vpop.xlane.xlu0 %1289
          %v1291 = vrot.slane %v1290, 4
          %v1292 = vadd.f32 %v1290, %v1291
          %v1293 = vrot.slane %v1292, 2
          %v1294 = vadd.f32 %v1292, %v1293
          %v1295 = vrot.slane %v1294, 1
          %v1296 = vadd.f32 %v1294, %v1295
          %s1297 = vtos %v1296
          %s1298 = sadd.f32 %s1256, %s1297
          %s1299 = scalar_lea.smem [#allocation3], 0
          %1300 = sst [smem:[%s1299]] %s1298
        $region76: #{tpu_custom_call.1} parent=47 // pred_fallthru
          _
        // Predicated region
        $region77: #{tpu_custom_call.1} parent=47 // pred_check
          %p1301 = pneg %p1246
        $region78: #{tpu_custom_call.1} parent=47 // pred_check_branch
          %1303 = sbr.rel (%p1301) target = $region80
        $region79: #{tpu_custom_call.1} parent=47 // pred_region
          %v1304 = vld [vmem:[%s530] sm:$0x1]
          %v1305 = vld [vmem:[%s533] sm:$0x1]
          %v1306 = vmax.f32 %v1305, 0.0
          %v1307 = vand.u32 2147483647, %v1305
          %v1308 = vsub.f32 0.0, %v1307
          %v1309 = vmul.f32 %v1308, 1.442695
          %v1310 = vpow.pop %v1309
          %v1311 = vadd.f32 %v1310, 1.0
          %v1312 = vlog2.pop %v1311
          %v1313 = vmul.f32 %v1312, 0.6931472
          %v1314 = vmul.f32 -0.5, %v1310
          %v1315 = vadd.f32 %v1314, 1.0
          %v1316 = vmul.f32 %v1315, %v1310
          %v1317 = vand.u32 2147483647, %v1310
          %vm1318 = vcmp.lt.f32.partialorder %v1317, 0.0004427343
          %v1319 = vsel %vm1318, %v1316, %v1313
          %v1320 = vadd.f32 %v1306, %v1319
          %v1321 = vld [vmem:[%s536] sm:$0x1]
          %v1322 = vmul.f32 %v1320, %v1321
          %v1323 = vadd.f32 %v1304, %v1322
          %v1324 = vld [vmem:[#allocation2] sm:$0xff]
          %v1325 = vld [vmem:[#allocation2 + $0x8] sm:$0xff]
          %v1327 = vlaneseq
          %v1328 = vshrl.u32 %v1327, 7
          %v1329 = vsub.s32 0, %v1328
          %v1330 = vrot.slane %v1323, %v1329
          %v1332 = vadd.f32 %v1324, %v1330
          %v1333 = vadd.f32 %v1325, %v1330
          %1334 = vst [vmem:[%s516] sm:$0xff] %v1332
          %1335 = vst [vmem:[%s516 + $0x8] sm:$0xff] %v1333
          %s1336 = sld [smem:[#allocation3]]
          %v1337 = vstv %s1336
          %1338 = vst [vmem:[%s523] sm:$0xff] %v1337
        $region80: #{tpu_custom_call.1} parent=47 // pred_fallthru
          _
        %s1339 = sand.u32 %s254, 1
        %s1340 = scalar_lea.sflag [#allocation6], %s1339
        %s1341 = sand.u32 %s254, 1
        %s1342 = smul.addr %s1341, 16
        %s1343 = scalar_lea.vmem [#allocation12], %s1342
        %s1344 = sand.u32 %s282, 1
        %s1345 = scalar_lea.sflag [#allocation14], %s1344
        %s1346 = sand.u32 %s282, 1
        %s1347 = smul.addr %s1346, 8
        %s1348 = scalar_lea.vmem [#allocation13], %s1347
        // Predicated region
        $region81: #{tpu_custom_call.1} parent=47 // pred_check
          %p1349 = pneg %p264
        $region82: #{tpu_custom_call.1} parent=47 // pred_check_branch
          %1351 = sbr.rel (%p1349) target = $region84
        $region83: #{tpu_custom_call.1} parent=47 // pred_region
          %s1352 = smul.u32 2, %s40
          %s1354 = ssub.s32 256, 256
          %1355 = vsyncadd %s1340, %s1354
          %s1356 = smul.addr %s1352, 2
          %s1357 = sadd.s32 %s41, %s1356
          %s1358 = smul.addr %s1357, 128
          %s1359 = scalar_lea.hbm %s7, %s1358
          %s1360 = sshll.u32 %s1343, 4
          %s1361 = int_to_ptr.vmem [resolvable:$true] %s1360
          %1366 = dma.vmem_to_hbm [thread:$0]  %s1361, 256, %s1359, %s1340, 128, 256, 8
        $region84: #{tpu_custom_call.1} parent=47 // pred_fallthru
          _
        // Predicated region
        $region85: #{tpu_custom_call.1} parent=47 // pred_check
          %p1367 = pneg %p292
        $region86: #{tpu_custom_call.1} parent=47 // pred_check_branch
          %1369 = sbr.rel (%p1367) target = $region88
        $region87: #{tpu_custom_call.1} parent=47 // pred_region
          %s1371 = ssub.s32 128, 128
          %1372 = vsyncadd %s1345, %s1371
          %s1373 = smul.addr %s40, 2
          %s1374 = sadd.s32 %s41, %s1373
          %s1375 = smul.addr %s1374, 128
          %s1376 = scalar_lea.hbm %s8, %s1375
          %s1378 = sshll.u32 %s1348, 4
          %s1379 = int_to_ptr.vmem [resolvable:$true] %s1378
          %1381 = dma.vmem_to_hbm [thread:$0]  %s1379, 128, %s1376, %s1345
        $region88: #{tpu_custom_call.1} parent=47 // pred_fallthru
          _
      $region48: #{tpu_custom_call.1} parent=5 // pred_fallthru
        _
      %p1382 = scmp.le.s32.totalorder 2, %s30
      // Predicated region
      $region89: #{tpu_custom_call.1} parent=5 // pred_check
        %p1383 = pneg %p1382
      $region90: #{tpu_custom_call.1} parent=5 // pred_check_branch
        %1385 = sbr.rel (%p1383) target = $region92
      $region91: #{tpu_custom_call.1} parent=5 // pred_region
        %s1386 = ssub.s32 %s30, 2
        // Predicated region
        $region93: #{tpu_custom_call.1} parent=91 // pred_check
          %p1387 = pneg %p270
        $region94: #{tpu_custom_call.1} parent=91 // pred_check_branch
          %1389 = sbr.rel (%p1387) target = $region96
        $region95: #{tpu_custom_call.1} parent=91 // pred_region
          %s1390 = sand.u32 %s255, 1
          %s1391 = scalar_lea.sflag [#allocation6], %s1390
          %s1392 = sand.u32 %s255, 1
          %s1393 = smul.addr %s1392, 16
          %s1394 = scalar_lea.vmem [#allocation12], %s1393
          %1395 = dma.done %s1391, 256
        $region96: #{tpu_custom_call.1} parent=91 // pred_fallthru
          _
        // Predicated region
        $region97: #{tpu_custom_call.1} parent=91 // pred_check
          %p1396 = pneg %p298
        $region98: #{tpu_custom_call.1} parent=91 // pred_check_branch
          %1398 = sbr.rel (%p1396) target = $region100
        $region99: #{tpu_custom_call.1} parent=91 // pred_region
          %s1399 = sand.u32 %s283, 1
          %s1400 = scalar_lea.sflag [#allocation14], %s1399
          %s1401 = sand.u32 %s283, 1
          %s1402 = smul.addr %s1401, 8
          %s1403 = scalar_lea.vmem [#allocation13], %s1402
          %1404 = dma.done %s1400, 128
        $region100: #{tpu_custom_call.1} parent=91 // pred_fallthru
          _
      $region92: #{tpu_custom_call.1} parent=5 // pred_fallthru
        _
    $region6: #{tpu_custom_call.1} parent=1 // loop_footer
      %s34 = sadd.s32 1, %s30
    $region7: #{tpu_custom_call.1} parent=1 // loop_footer_branch
      %29 = sbr.rel target = $region3
    $region8: #{tpu_custom_call.1} parent=1 // loop_exit
      _
    %1405 = vsyncpa [#allocation5], 1
    %s1406 = scalar_lea.sflag [#allocation5], 1
    %1407 = vsyncpa %s1406, 1
    %1408 = vsyncpa [#allocation8], 1
    %s1409 = scalar_lea.sflag [#allocation8], 1
    %1410 = vsyncpa %s1409, 1
    %1411 = vsyncpa [#allocation11], 1
    %s1412 = scalar_lea.sflag [#allocation11], 1
    %1413 = vsyncpa %s1412, 1
    %1414 = vsyncpa [#allocation6], 1
    %s1415 = scalar_lea.sflag [#allocation6], 1
    %1416 = vsyncpa %s1415, 1
    %1417 = vsyncpa [#allocation14], 1
    %s1418 = scalar_lea.sflag [#allocation14], 1
    %1419 = vsyncpa %s1418, 1

</llo_original>
